<compile_context>
chip_gen: v7x
topology: tpu7x:2x2x1
jax: 0.10.0
libtpu: 0.0.40
codegen_flags: <defaults>
</compile_context>

<pallas_src>
import functools
import math

import jax
import jax.numpy as jnp
from jax.experimental import pallas as pl
from jax.experimental.pallas import tpu as pltpu


def _make_kernel(S, E, H, D):
    HD = H * D

    def kernel(x_ref, wqkv_ref, bqkv_ref, wf_ref, bf_ref, o_ref):
        # One program == one batch element.
        x = x_ref[...]                                                    # (S, E)

        # Fused Q|K|V projection for all heads: one (S,E)@(E,3HD) MXU push.
        # 1/sqrt(D) is pre-folded into the Q columns / Q bias.
        qkv = jnp.dot(x, wqkv_ref[...],
                      preferred_element_type=jnp.float32) + bqkv_ref[...]  # (S, 3HD)

        acc = bf_ref[...]                              # (1, E); start from bias
        for h in range(H):                             # static unroll, H small
            lo = h * D
            q = qkv[:, lo:lo + D]                              # (S, D)
            k = qkv[:, HD + lo:HD + lo + D]                    # (S, D)
            v = qkv[:, 2 * HD + lo:2 * HD + lo + D]            # (S, D)

            # Scaled dot-product attention scores (scale already in q).
            s = jnp.einsum('qd,kd->qk', q, k,
                           preferred_element_type=jnp.float32)             # (S, S)
            s = s - jnp.max(s, axis=-1, keepdims=True)
            p = jnp.exp(s)
            p = p * pl.reciprocal(jnp.sum(p, axis=-1, keepdims=True),
                                  approx=True)

            # mean over query rows folded into the PV product: (1,S)@(S,D);
            # the (S,D) context tensor never materializes.
            pbar = jnp.mean(p, axis=0, keepdims=True)                       # (1, S)
            m = jnp.dot(pbar, v, preferred_element_type=jnp.float32)        # (1, D)

            # mean commutes with the final linear: accumulate this head's
            # (1,D)@(D,E) contribution. wf slice is a static, sublane-aligned
            # ref view (offsets are multiples of 8).
            acc = acc + jnp.dot(m, wf_ref[lo:lo + D, :],
                                preferred_element_type=jnp.float32)         # (1, E)

        o_ref[...] = acc.reshape(1, 1, E)

    return kernel


def fuse_self_attention_params(wq, bq, wk, bk, wv, bv, wf, bf):
    """Pre-fuse nn.Linear parameters ONCE at init time (not per forward call).

    wq/wk/wv: (H, D, E) in nn.Linear (out, in) convention; bq/bk/bv: (H, D);
    wf: (E, H*D); bf: (E,).
    Returns (w_qkv (E,3HD), b_qkv (1,3HD), wf_t (HD,E), bf2 (1,E)) with the
    1/sqrt(D) softmax scale folded into the Q columns and Q bias.
    """
    H, D, E = wq.shape
    HD = H * D
    scale = 1.0 / math.sqrt(D)

    def fuse(w):                                   # (H, D, E) -> (E, H*D)
        return jnp.transpose(w, (2, 0, 1)).reshape(E, HD)

    w_qkv = jnp.concatenate([fuse(wq) * scale, fuse(wk), fuse(wv)], axis=1)
    b_qkv = jnp.concatenate(
        [bq.reshape(-1) * scale, bk.reshape(-1), bv.reshape(-1)]).reshape(1, 3 * HD)
    wf_t = wf.T                                                            # (HD, E)
    bf2 = bf.reshape(1, E)
    return w_qkv, b_qkv, wf_t, bf2


@functools.partial(jax.jit, static_argnames=("num_head",))
def self_attention_pallas(x, w_qkv, b_qkv, wf_t, bf2, *, num_head):
    """x: (B, S, E); fused params from fuse_self_attention_params. -> (B, E)."""
    B, S, E = x.shape
    HD = wf_t.shape[0]
    H = num_head
    D = HD // H

    # Wrapper-side reshape (free layout plumbing); kernel sees (B*S, E) rows
    # and takes an (S, E) row slab per program.
    x2 = x.reshape(B * S, E)

    grid_spec = pltpu.PrefetchScalarGridSpec(
        num_scalar_prefetch=0,
        grid=(B,),                      # one batch element per program;
                                        # "parallel" lets v7x use both TCs.
        in_specs=[
            pl.BlockSpec((S, E), lambda b: (b, 0)),
            pl.BlockSpec((E, 3 * HD), lambda b: (0, 0)),
            pl.BlockSpec((1, 3 * HD), lambda b: (0, 0)),
            pl.BlockSpec((HD, E), lambda b: (0, 0)),
            pl.BlockSpec((1, E), lambda b: (0, 0)),
        ],
        out_specs=pl.BlockSpec((1, 1, E), lambda b: (b, 0, 0)),
    )
    out = pl.pallas_call(
        _make_kernel(S, E, H, D),
        out_shape=jax.ShapeDtypeStruct((B, 1, E), jnp.float32),
        grid_spec=grid_spec,
        compiler_params=pltpu.CompilerParams(
            dimension_semantics=("parallel",)),
    )(x2, w_qkv, b_qkv, wf_t, bf2)
    return out.reshape(B, E)


def self_attention_ref(x, wq, bq, wk, bk, wv, bv, wf, bf):
    """Pure-JAX reference mirroring the PyTorch forward."""
    H, D, _ = wq.shape
    outs = []
    for h in range(H):
        q = x @ wq[h].T + bq[h]
        k = x @ wk[h].T + bk[h]
        v = x @ wv[h].T + bv[h]
        s = jnp.einsum("bqd,bkd->bqk", q, k) / math.sqrt(D)
        p = jax.nn.softmax(s, axis=-1)
        outs.append(jnp.einsum("bqk,bkd->bqd", p, v))
    concat = jnp.concatenate(outs, axis=-1)
    final = concat @ wf.T + bf
    return jnp.mean(final, axis=1)


if __name__ == "__main__":
    B, S, E, H = 2, 8, 32, 4
    D = E // H

    key = jax.random.PRNGKey(0)
    ks = jax.random.split(key, 9)
    scale = 1.0 / math.sqrt(E)
    x  = jax.random.normal(ks[0], (B, S, E), dtype=jnp.float32)
    wq = jax.random.uniform(ks[1], (H, D, E), minval=-scale, maxval=scale)
    bq = jax.random.uniform(ks[2], (H, D), minval=-scale, maxval=scale)
    wk = jax.random.uniform(ks[3], (H, D, E), minval=-scale, maxval=scale)
    bk = jax.random.uniform(ks[4], (H, D), minval=-scale, maxval=scale)
    wv = jax.random.uniform(ks[5], (H, D, E), minval=-scale, maxval=scale)
    bv = jax.random.uniform(ks[6], (H, D), minval=-scale, maxval=scale)
    wf = jax.random.uniform(ks[7], (E, H * D), minval=-scale, maxval=scale)
    bf = jax.random.uniform(ks[8], (E,), minval=-scale, maxval=scale)

    # Fuse once at "init time"; every forward call reuses the fused params.
    fused = fuse_self_attention_params(wq, bq, wk, bk, wv, bv, wf, bf)

    out = self_attention_pallas(x, *fused, num_head=H)
    jax.block_until_ready(out)

    ref = self_attention_ref(x, wq, bq, wk, bk, wv, bv, wf, bf)
    assert out.shape == (B, E)
    # Tolerance loosened vs. 1e-5: softmax uses the EUP approximate reciprocal
    # (pl.reciprocal(approx=True)), the only deviation from the reference math.
    assert jnp.allclose(out, ref, atol=2e-3, rtol=2e-3), (
        f"max diff {jnp.max(jnp.abs(out - ref))}")
    print("KERNEL_OK")
</pallas_src>

<mosaic_0001>
module attributes {stable_mosaic.version = 11 : i64} {
  func.func @kernel(%arg0: i32, %arg1: memref<8x32xf32, #tpu.memory_space<vmem>>, %arg2: memref<32x96xf32, #tpu.memory_space<vmem>>, %arg3: memref<1x96xf32, #tpu.memory_space<vmem>>, %arg4: memref<32x32xf32, #tpu.memory_space<vmem>>, %arg5: memref<1x32xf32, #tpu.memory_space<vmem>>, %arg6: memref<1x1x32xf32, #tpu.memory_space<vmem>>) attributes {dimension_semantics = [#tpu.dimension_semantics<parallel>], iteration_bounds = array<i64: 2>, scalar_prefetch = 0 : i64, scratch_operands = 0 : i64, tpu.core_type = #tpu.core_type<tc>, window_params = [{transform_indices = @transform_0, window_bounds = array<i64: 8, 32>}, {pipeline_mode = #tpu.pipeline_mode<synchronous>, transform_indices = @transform_1, window_bounds = array<i64: 32, 96>}, {pipeline_mode = #tpu.pipeline_mode<synchronous>, transform_indices = @transform_2, window_bounds = array<i64: 1, 96>}, {pipeline_mode = #tpu.pipeline_mode<synchronous>, transform_indices = @transform_3, window_bounds = array<i64: 32, 32>}, {pipeline_mode = #tpu.pipeline_mode<synchronous>, transform_indices = @transform_4, window_bounds = array<i64: 1, 32>}, {transform_indices = @transform_5, window_bounds = array<i64: 1, 1, 32>}]} {
    %c0 = arith.constant 0 : index
    %c0_0 = arith.constant 0 : index
    %0 = vector.load %arg1[%c0, %c0_0] : memref<8x32xf32, #tpu.memory_space<vmem>>, vector<8x32xf32>
    %c0_1 = arith.constant 0 : index
    %c0_2 = arith.constant 0 : index
    %1 = vector.load %arg2[%c0_1, %c0_2] : memref<32x96xf32, #tpu.memory_space<vmem>>, vector<32x96xf32>
    %cst = arith.constant dense<0.000000e+00> : vector<8x96xf32>
    %2 = tpu.matmul %0, %1, %cst {dimension_numbers = #tpu.dot_dimension_numbers<[1], [0], [0], [1], [0, 0, 1, 1], [], []>} : vector<8x32xf32>, vector<32x96xf32>, vector<8x96xf32> -> vector<8x96xf32>
    %c0_3 = arith.constant 0 : index
    %c0_4 = arith.constant 0 : index
    %3 = vector.load %arg3[%c0_3, %c0_4] : memref<1x96xf32, #tpu.memory_space<vmem>>, vector<1x96xf32>
    %4 = vector.broadcast %3 : vector<1x96xf32> to vector<8x96xf32>
    %5 = arith.addf %2, %4 : vector<8x96xf32>
    %c0_5 = arith.constant 0 : index
    %c0_6 = arith.constant 0 : index
    %6 = vector.load %arg5[%c0_5, %c0_6] : memref<1x32xf32, #tpu.memory_space<vmem>>, vector<1x32xf32>
    %7 = vector.extract_strided_slice %5 {offsets = [0, 0], sizes = [8, 8], strides = [1, 1]} : vector<8x96xf32> to vector<8x8xf32>
    %8 = vector.extract_strided_slice %5 {offsets = [0, 32], sizes = [8, 8], strides = [1, 1]} : vector<8x96xf32> to vector<8x8xf32>
    %9 = vector.extract_strided_slice %5 {offsets = [0, 64], sizes = [8, 8], strides = [1, 1]} : vector<8x96xf32> to vector<8x8xf32>
    "tpu.trace_start"() <{level = 10 : i32, message = "qd,kd->qk"}> : () -> ()
    %cst_7 = arith.constant dense<0.000000e+00> : vector<8x8xf32>
    %10 = tpu.matmul %7, %8, %cst_7 {dimension_numbers = #tpu.dot_dimension_numbers<[1], [1], [0], [0], [0, 0, 1, 0], [], []>} : vector<8x8xf32>, vector<8x8xf32>, vector<8x8xf32> -> vector<8x8xf32>
    "tpu.trace_stop"() : () -> ()
    %cst_8 = arith.constant dense<0xFF800000> : vector<8xf32>
    %11 = vector.multi_reduction <maximumf>, %10, %cst_8 [1] : vector<8x8xf32> to vector<8xf32>
    %12 = vector.shape_cast %11 : vector<8xf32> to vector<8x1xf32>
    %13 = vector.broadcast %12 : vector<8x1xf32> to vector<8x8xf32>
    %14 = arith.subf %10, %13 : vector<8x8xf32>
    %15 = math.exp %14 : vector<8x8xf32>
    %cst_9 = arith.constant dense<0.000000e+00> : vector<8xf32>
    %16 = vector.multi_reduction <add>, %15, %cst_9 [1] : vector<8x8xf32> to vector<8xf32>
    %17 = vector.shape_cast %16 : vector<8xf32> to vector<8x1xf32>
    %18 = tpu.reciprocal %17 {approx = true} : vector<8x1xf32> -> vector<8x1xf32>
    %19 = vector.broadcast %18 : vector<8x1xf32> to vector<8x8xf32>
    %20 = arith.mulf %15, %19 : vector<8x8xf32>
    %cst_10 = arith.constant dense<0.000000e+00> : vector<8xf32>
    %21 = vector.multi_reduction <add>, %20, %cst_10 [0] : vector<8x8xf32> to vector<8xf32>
    %22 = vector.shape_cast %21 : vector<8xf32> to vector<1x8xf32>
    %cst_11 = arith.constant 8.000000e+00 : f32
    %23 = vector.broadcast %cst_11 : f32 to vector<1x8xf32>
    %24 = arith.divf %22, %23 : vector<1x8xf32>
    %cst_12 = arith.constant dense<0.000000e+00> : vector<1x8xf32>
    %25 = tpu.matmul %24, %9, %cst_12 {dimension_numbers = #tpu.dot_dimension_numbers<[1], [0], [0], [1], [0, 0, 1, 1], [], []>} : vector<1x8xf32>, vector<8x8xf32>, vector<1x8xf32> -> vector<1x8xf32>
    %c0_13 = arith.constant 0 : index
    %c0_14 = arith.constant 0 : index
    %26 = vector.load %arg4[%c0_13, %c0_14] : memref<32x32xf32, #tpu.memory_space<vmem>>, vector<8x32xf32>
    %cst_15 = arith.constant dense<0.000000e+00> : vector<1x32xf32>
    %27 = tpu.matmul %25, %26, %cst_15 {dimension_numbers = #tpu.dot_dimension_numbers<[1], [0], [0], [1], [0, 0, 1, 1], [], []>} : vector<1x8xf32>, vector<8x32xf32>, vector<1x32xf32> -> vector<1x32xf32>
    %28 = arith.addf %6, %27 : vector<1x32xf32>
    %29 = vector.extract_strided_slice %5 {offsets = [0, 8], sizes = [8, 8], strides = [1, 1]} : vector<8x96xf32> to vector<8x8xf32>
    %30 = vector.extract_strided_slice %5 {offsets = [0, 40], sizes = [8, 8], strides = [1, 1]} : vector<8x96xf32> to vector<8x8xf32>
    %31 = vector.extract_strided_slice %5 {offsets = [0, 72], sizes = [8, 8], strides = [1, 1]} : vector<8x96xf32> to vector<8x8xf32>
    "tpu.trace_start"() <{level = 10 : i32, message = "qd,kd->qk"}> : () -> ()
    %cst_16 = arith.constant dense<0.000000e+00> : vector<8x8xf32>
    %32 = tpu.matmul %29, %30, %cst_16 {dimension_numbers = #tpu.dot_dimension_numbers<[1], [1], [0], [0], [0, 0, 1, 0], [], []>} : vector<8x8xf32>, vector<8x8xf32>, vector<8x8xf32> -> vector<8x8xf32>
    "tpu.trace_stop"() : () -> ()
    %cst_17 = arith.constant dense<0xFF800000> : vector<8xf32>
    %33 = vector.multi_reduction <maximumf>, %32, %cst_17 [1] : vector<8x8xf32> to vector<8xf32>
    %34 = vector.shape_cast %33 : vector<8xf32> to vector<8x1xf32>
    %35 = vector.broadcast %34 : vector<8x1xf32> to vector<8x8xf32>
    %36 = arith.subf %32, %35 : vector<8x8xf32>
    %37 = math.exp %36 : vector<8x8xf32>
    %cst_18 = arith.constant dense<0.000000e+00> : vector<8xf32>
    %38 = vector.multi_reduction <add>, %37, %cst_18 [1] : vector<8x8xf32> to vector<8xf32>
    %39 = vector.shape_cast %38 : vector<8xf32> to vector<8x1xf32>
    %40 = tpu.reciprocal %39 {approx = true} : vector<8x1xf32> -> vector<8x1xf32>
    %41 = vector.broadcast %40 : vector<8x1xf32> to vector<8x8xf32>
    %42 = arith.mulf %37, %41 : vector<8x8xf32>
    %cst_19 = arith.constant dense<0.000000e+00> : vector<8xf32>
    %43 = vector.multi_reduction <add>, %42, %cst_19 [0] : vector<8x8xf32> to vector<8xf32>
    %44 = vector.shape_cast %43 : vector<8xf32> to vector<1x8xf32>
    %cst_20 = arith.constant 8.000000e+00 : f32
    %45 = vector.broadcast %cst_20 : f32 to vector<1x8xf32>
    %46 = arith.divf %44, %45 : vector<1x8xf32>
    %cst_21 = arith.constant dense<0.000000e+00> : vector<1x8xf32>
    %47 = tpu.matmul %46, %31, %cst_21 {dimension_numbers = #tpu.dot_dimension_numbers<[1], [0], [0], [1], [0, 0, 1, 1], [], []>} : vector<1x8xf32>, vector<8x8xf32>, vector<1x8xf32> -> vector<1x8xf32>
    %c8 = arith.constant 8 : index
    %c0_22 = arith.constant 0 : index
    %48 = vector.load %arg4[%c8, %c0_22] : memref<32x32xf32, #tpu.memory_space<vmem>>, vector<8x32xf32>
    %cst_23 = arith.constant dense<0.000000e+00> : vector<1x32xf32>
    %49 = tpu.matmul %47, %48, %cst_23 {dimension_numbers = #tpu.dot_dimension_numbers<[1], [0], [0], [1], [0, 0, 1, 1], [], []>} : vector<1x8xf32>, vector<8x32xf32>, vector<1x32xf32> -> vector<1x32xf32>
    %50 = arith.addf %28, %49 : vector<1x32xf32>
    %51 = vector.extract_strided_slice %5 {offsets = [0, 16], sizes = [8, 8], strides = [1, 1]} : vector<8x96xf32> to vector<8x8xf32>
    %52 = vector.extract_strided_slice %5 {offsets = [0, 48], sizes = [8, 8], strides = [1, 1]} : vector<8x96xf32> to vector<8x8xf32>
    %53 = vector.extract_strided_slice %5 {offsets = [0, 80], sizes = [8, 8], strides = [1, 1]} : vector<8x96xf32> to vector<8x8xf32>
    "tpu.trace_start"() <{level = 10 : i32, message = "qd,kd->qk"}> : () -> ()
    %cst_24 = arith.constant dense<0.000000e+00> : vector<8x8xf32>
    %54 = tpu.matmul %51, %52, %cst_24 {dimension_numbers = #tpu.dot_dimension_numbers<[1], [1], [0], [0], [0, 0, 1, 0], [], []>} : vector<8x8xf32>, vector<8x8xf32>, vector<8x8xf32> -> vector<8x8xf32>
    "tpu.trace_stop"() : () -> ()
    %cst_25 = arith.constant dense<0xFF800000> : vector<8xf32>
    %55 = vector.multi_reduction <maximumf>, %54, %cst_25 [1] : vector<8x8xf32> to vector<8xf32>
    %56 = vector.shape_cast %55 : vector<8xf32> to vector<8x1xf32>
    %57 = vector.broadcast %56 : vector<8x1xf32> to vector<8x8xf32>
    %58 = arith.subf %54, %57 : vector<8x8xf32>
    %59 = math.exp %58 : vector<8x8xf32>
    %cst_26 = arith.constant dense<0.000000e+00> : vector<8xf32>
    %60 = vector.multi_reduction <add>, %59, %cst_26 [1] : vector<8x8xf32> to vector<8xf32>
    %61 = vector.shape_cast %60 : vector<8xf32> to vector<8x1xf32>
    %62 = tpu.reciprocal %61 {approx = true} : vector<8x1xf32> -> vector<8x1xf32>
    %63 = vector.broadcast %62 : vector<8x1xf32> to vector<8x8xf32>
    %64 = arith.mulf %59, %63 : vector<8x8xf32>
    %cst_27 = arith.constant dense<0.000000e+00> : vector<8xf32>
    %65 = vector.multi_reduction <add>, %64, %cst_27 [0] : vector<8x8xf32> to vector<8xf32>
    %66 = vector.shape_cast %65 : vector<8xf32> to vector<1x8xf32>
    %cst_28 = arith.constant 8.000000e+00 : f32
    %67 = vector.broadcast %cst_28 : f32 to vector<1x8xf32>
    %68 = arith.divf %66, %67 : vector<1x8xf32>
    %cst_29 = arith.constant dense<0.000000e+00> : vector<1x8xf32>
    %69 = tpu.matmul %68, %53, %cst_29 {dimension_numbers = #tpu.dot_dimension_numbers<[1], [0], [0], [1], [0, 0, 1, 1], [], []>} : vector<1x8xf32>, vector<8x8xf32>, vector<1x8xf32> -> vector<1x8xf32>
    %c16 = arith.constant 16 : index
    %c0_30 = arith.constant 0 : index
    %70 = vector.load %arg4[%c16, %c0_30] : memref<32x32xf32, #tpu.memory_space<vmem>>, vector<8x32xf32>
    %cst_31 = arith.constant dense<0.000000e+00> : vector<1x32xf32>
    %71 = tpu.matmul %69, %70, %cst_31 {dimension_numbers = #tpu.dot_dimension_numbers<[1], [0], [0], [1], [0, 0, 1, 1], [], []>} : vector<1x8xf32>, vector<8x32xf32>, vector<1x32xf32> -> vector<1x32xf32>
    %72 = arith.addf %50, %71 : vector<1x32xf32>
    %73 = vector.extract_strided_slice %5 {offsets = [0, 24], sizes = [8, 8], strides = [1, 1]} : vector<8x96xf32> to vector<8x8xf32>
    %74 = vector.extract_strided_slice %5 {offsets = [0, 56], sizes = [8, 8], strides = [1, 1]} : vector<8x96xf32> to vector<8x8xf32>
    %75 = vector.extract_strided_slice %5 {offsets = [0, 88], sizes = [8, 8], strides = [1, 1]} : vector<8x96xf32> to vector<8x8xf32>
    "tpu.trace_start"() <{level = 10 : i32, message = "qd,kd->qk"}> : () -> ()
    %cst_32 = arith.constant dense<0.000000e+00> : vector<8x8xf32>
    %76 = tpu.matmul %73, %74, %cst_32 {dimension_numbers = #tpu.dot_dimension_numbers<[1], [1], [0], [0], [0, 0, 1, 0], [], []>} : vector<8x8xf32>, vector<8x8xf32>, vector<8x8xf32> -> vector<8x8xf32>
    "tpu.trace_stop"() : () -> ()
    %cst_33 = arith.constant dense<0xFF800000> : vector<8xf32>
    %77 = vector.multi_reduction <maximumf>, %76, %cst_33 [1] : vector<8x8xf32> to vector<8xf32>
    %78 = vector.shape_cast %77 : vector<8xf32> to vector<8x1xf32>
    %79 = vector.broadcast %78 : vector<8x1xf32> to vector<8x8xf32>
    %80 = arith.subf %76, %79 : vector<8x8xf32>
    %81 = math.exp %80 : vector<8x8xf32>
    %cst_34 = arith.constant dense<0.000000e+00> : vector<8xf32>
    %82 = vector.multi_reduction <add>, %81, %cst_34 [1] : vector<8x8xf32> to vector<8xf32>
    %83 = vector.shape_cast %82 : vector<8xf32> to vector<8x1xf32>
    %84 = tpu.reciprocal %83 {approx = true} : vector<8x1xf32> -> vector<8x1xf32>
    %85 = vector.broadcast %84 : vector<8x1xf32> to vector<8x8xf32>
    %86 = arith.mulf %81, %85 : vector<8x8xf32>
    %cst_35 = arith.constant dense<0.000000e+00> : vector<8xf32>
    %87 = vector.multi_reduction <add>, %86, %cst_35 [0] : vector<8x8xf32> to vector<8xf32>
    %88 = vector.shape_cast %87 : vector<8xf32> to vector<1x8xf32>
    %cst_36 = arith.constant 8.000000e+00 : f32
    %89 = vector.broadcast %cst_36 : f32 to vector<1x8xf32>
    %90 = arith.divf %88, %89 : vector<1x8xf32>
    %cst_37 = arith.constant dense<0.000000e+00> : vector<1x8xf32>
    %91 = tpu.matmul %90, %75, %cst_37 {dimension_numbers = #tpu.dot_dimension_numbers<[1], [0], [0], [1], [0, 0, 1, 1], [], []>} : vector<1x8xf32>, vector<8x8xf32>, vector<1x8xf32> -> vector<1x8xf32>
    %c24 = arith.constant 24 : index
    %c0_38 = arith.constant 0 : index
    %92 = vector.load %arg4[%c24, %c0_38] : memref<32x32xf32, #tpu.memory_space<vmem>>, vector<8x32xf32>
    %cst_39 = arith.constant dense<0.000000e+00> : vector<1x32xf32>
    %93 = tpu.matmul %91, %92, %cst_39 {dimension_numbers = #tpu.dot_dimension_numbers<[1], [0], [0], [1], [0, 0, 1, 1], [], []>} : vector<1x8xf32>, vector<8x32xf32>, vector<1x32xf32> -> vector<1x32xf32>
    %94 = arith.addf %72, %93 : vector<1x32xf32>
    %95 = vector.shape_cast %94 : vector<1x32xf32> to vector<1x1x32xf32>
    %c0_40 = arith.constant 0 : index
    %c0_41 = arith.constant 0 : index
    %c0_42 = arith.constant 0 : index
    %96 = vector.load %arg6[%c0_40, %c0_41, %c0_42] : memref<1x1x32xf32, #tpu.memory_space<vmem>>, vector<1x1x32xf32>
    tpu.vector_store %arg6[%c0_40, %c0_41, %c0_42], %95 {strides = array<i32>} : memref<1x1x32xf32, #tpu.memory_space<vmem>>, vector<1x1x32xf32>,
    return
  }
  func.func @transform_0(%arg0: i32) -> (i32, i32) {
    %c0_i32 = arith.constant 0 : i32
    %c0_i32_0 = arith.constant 0 : i32
    return %arg0, %c0_i32 : i32, i32
  }
  func.func @transform_1(%arg0: i32) -> (i32, i32) {
    %c0_i32 = arith.constant 0 : i32
    %c0_i32_0 = arith.constant 0 : i32
    %c0_i32_1 = arith.constant 0 : i32
    return %c0_i32, %c0_i32_0 : i32, i32
  }
  func.func @transform_2(%arg0: i32) -> (i32, i32) {
    %c0_i32 = arith.constant 0 : i32
    %c0_i32_0 = arith.constant 0 : i32
    %c0_i32_1 = arith.constant 0 : i32
    return %c0_i32, %c0_i32_0 : i32, i32
  }
  func.func @transform_3(%arg0: i32) -> (i32, i32) {
    %c0_i32 = arith.constant 0 : i32
    %c0_i32_0 = arith.constant 0 : i32
    %c0_i32_1 = arith.constant 0 : i32
    return %c0_i32, %c0_i32_0 : i32, i32
  }
  func.func @transform_4(%arg0: i32) -> (i32, i32) {
    %c0_i32 = arith.constant 0 : i32
    %c0_i32_0 = arith.constant 0 : i32
    %c0_i32_1 = arith.constant 0 : i32
    return %c0_i32, %c0_i32_0 : i32, i32
  }
  func.func @transform_5(%arg0: i32) -> (i32, i32, i32) {
    %c0_i32 = arith.constant 0 : i32
    %c0_i32_0 = arith.constant 0 : i32
    %c0_i32_1 = arith.constant 0 : i32
    return %arg0, %c0_i32, %c0_i32_0 : i32, i32, i32
  }
}

</mosaic_0001>

<llo_original>
// kernel: self_attention_pallas.1
$region0: #{self_attention_pallas.1}
  #allocation0 [shape = 'u32[]', space=smem, size = 0x4, offset = 0x4, fixed_abs, tag = 'smem constant byte address 0x4 - core index']
  #allocation1 [shape = 'u32[144,128]{1,0:T(1,128)}', space=vmem, size = 0x12000, scoped, tag = 'internal scratch']
  %s0 = inlined_call_operand.hbm [shape: f32[16,32], index: 0, kind: input, shape index: {}]
  %s1 = inlined_call_operand.hbm [shape: f32[32,96], index: 1, kind: input, shape index: {}]
  %s2 = inlined_call_operand.vmem [shape: f32[1,96], index: 2, kind: input, shape index: {}]
  %s3 = inlined_call_operand.hbm [shape: f32[32,32], index: 3, kind: input, shape index: {}]
  %s4 = inlined_call_operand.vmem [shape: f32[1,32], index: 4, kind: input, shape index: {}]
  %s5 = inlined_call_operand.hbm [shape: f32[2,1,32], index: 5, kind: output, shape index: {}]
  %s6 = sld [smem:[#allocation0]]
  $region65: #{self_attention_pallas.1} parent=0
    _
  %s8 = ssub.s32 1, %s6
  %s9 = scalar_select 0, %s8, %s6
  $region1: #{self_attention_pallas.1} parent=0
    #allocation2 [shape = 'u8[8192]{0}', space=vmem, size = 0x2000, scoped, tag = 'input window, operand 0']
    #allocation3 [shape = 's32[2]{0}', space=sflag, size = 0x8, scoped, tag = 'scoped memory for self_attention_pallas.1']
    #allocation4 [shape = 's32[2]{0}', space=sflag, size = 0x8, scoped, tag = 'scoped memory for self_attention_pallas.1']
    #allocation5 [shape = 'u8[16384]{0}', space=vmem, size = 0x4000, scoped, tag = 'input window, operand 1, single buffered']
    #allocation6 [shape = 's32[1]{0}', space=sflag, size = 0x4, scoped, tag = 'scoped memory for self_attention_pallas.1']
    #allocation7 [shape = 'u8[16384]{0}', space=vmem, size = 0x4000, scoped, tag = 'input window, operand 3, single buffered']
    #allocation8 [shape = 'u8[1024]{0}', space=vmem, size = 0x400, scoped, tag = 'output window, operand 0']
    %10 = vsyncpa [#allocation3], 0
    %s11 = scalar_lea.sflag [#allocation3], 1
    %12 = vsyncpa %s11, 0
    %13 = vsyncpa [#allocation6], 0
    %14 = vsyncpa [#allocation4], 0
    %s15 = scalar_lea.sflag [#allocation4], 1
    %16 = vsyncpa %s15, 0
    loop: start=0, step=1, limit=4
    $region2: #{self_attention_pallas.1} parent=1 // loop_pre_header
      _
    $region3: #{self_attention_pallas.1} parent=1 // loop_header
      %s18 = sphi 0, %s22
      %p19 = scmp.ge.s32.totalorder %s18, 4
      %s28 = sphi 0, %s30
      %s31 = sphi 0, %s28
      %s32 = sphi 0, %s31
      %s48 = sphi 0, %s32
      %s52 = sphi 0, %s52
      %s54 = sphi 0, %s52
      %s55 = sphi 0, %s54
      %s69 = sphi 0, %s55
      %s73 = sphi 0, %s73
      %s75 = sphi 0, %s73
      %s76 = sphi 0, %s75
      %s90 = sphi 0, %s76
      %s94 = sphi 0, %s94
      %s96 = sphi 0, %s94
      %s97 = sphi 0, %s96
      %s111 = sphi 0, %s97
      %s115 = sphi 0, %s115
      %s117 = sphi 0, %s115
      %s118 = sphi 0, %s117
      %s132 = sphi 0, %s118
      %s138 = sphi 0, %s140
      %s141 = sphi 0, %s138
      %s142 = sphi 0, %s141
      %s158 = sphi 0, %s142
    $region4: #{self_attention_pallas.1} parent=1 // loop_header_branch
      %21 = sbr.rel (%p19) target = $region8
    $region5: #{self_attention_pallas.1} parent=1 // loop_body
      %s23 = ssub.s32 %s18, 1
      %s24 = ssub.s32 %s18, 2
      %s25 = sadd.s32 %s18, 1
      %s26 = ssub.s32 %s18, %s25
      %p27 = scmp.eq.s32.totalorder %s26, 0
      %s29 = sadd.s32 %s28, 1
      %s30 = scalar_select %p27, %s28, %s29
      %p33 = pneg %p27
      %p34 = scmp.eq.s32.totalorder %s18, 1
      %p35 = por %p33, %p34
      %p36 = scmp.ne.s32.totalorder %s28, %s31
      %p37 = scmp.eq.s32.totalorder %s18, 0
      %p38 = por %p36, %p37
      %p39 = scmp.ne.s32.totalorder %s28, %s31
      %p40 = scmp.eq.s32.totalorder %s23, 1
      %p41 = por %p39, %p40
      %p42 = scmp.ne.s32.totalorder %s31, %s32
      %p43 = scmp.eq.s32.totalorder %s23, 0
      %p44 = por %p42, %p43
      %p45 = scmp.ne.s32.totalorder %s31, %s32
      %p46 = scmp.eq.s32.totalorder %s24, 1
      %p47 = por %p45, %p46
      %p49 = scmp.ne.s32.totalorder %s32, %s48
      %p50 = scmp.eq.s32.totalorder %s24, 0
      %p51 = por %p49, %p50
      %s53 = sadd.s32 %s52, 1
      %p56 = scmp.eq.s32.totalorder %s18, 1
      %p57 = scmp.ne.s32.totalorder %s52, %s54
      %p58 = scmp.eq.s32.totalorder %s18, 0
      %p59 = por %p57, %p58
      %p60 = scmp.ne.s32.totalorder %s52, %s54
      %p61 = scmp.eq.s32.totalorder %s23, 1
      %p62 = por %p60, %p61
      %p63 = scmp.ne.s32.totalorder %s54, %s55
      %p64 = scmp.eq.s32.totalorder %s23, 0
      %p65 = por %p63, %p64
      %p66 = scmp.ne.s32.totalorder %s54, %s55
      %p67 = scmp.eq.s32.totalorder %s24, 1
      %p68 = por %p66, %p67
      %p70 = scmp.ne.s32.totalorder %s55, %s69
      %p71 = scmp.eq.s32.totalorder %s24, 0
      %p72 = por %p70, %p71
      %s74 = sadd.s32 %s73, 1
      %p77 = scmp.eq.s32.totalorder %s18, 1
      %p78 = scmp.ne.s32.totalorder %s73, %s75
      %p79 = scmp.eq.s32.totalorder %s18, 0
      %p80 = por %p78, %p79
      %p81 = scmp.ne.s32.totalorder %s73, %s75
      %p82 = scmp.eq.s32.totalorder %s23, 1
      %p83 = por %p81, %p82
      %p84 = scmp.ne.s32.totalorder %s75, %s76
      %p85 = scmp.eq.s32.totalorder %s23, 0
      %p86 = por %p84, %p85
      %p87 = scmp.ne.s32.totalorder %s75, %s76
      %p88 = scmp.eq.s32.totalorder %s24, 1
      %p89 = por %p87, %p88
      %p91 = scmp.ne.s32.totalorder %s76, %s90
      %p92 = scmp.eq.s32.totalorder %s24, 0
      %p93 = por %p91, %p92
      %s95 = sadd.s32 %s94, 1
      %p98 = scmp.eq.s32.totalorder %s18, 1
      %p99 = scmp.ne.s32.totalorder %s94, %s96
      %p100 = scmp.eq.s32.totalorder %s18, 0
      %p101 = por %p99, %p100
      %p102 = scmp.ne.s32.totalorder %s94, %s96
      %p103 = scmp.eq.s32.totalorder %s23, 1
      %p104 = por %p102, %p103
      %p105 = scmp.ne.s32.totalorder %s96, %s97
      %p106 = scmp.eq.s32.totalorder %s23, 0
      %p107 = por %p105, %p106
      %p108 = scmp.ne.s32.totalorder %s96, %s97
      %p109 = scmp.eq.s32.totalorder %s24, 1
      %p110 = por %p108, %p109
      %p112 = scmp.ne.s32.totalorder %s97, %s111
      %p113 = scmp.eq.s32.totalorder %s24, 0
      %p114 = por %p112, %p113
      %s116 = sadd.s32 %s115, 1
      %p119 = scmp.eq.s32.totalorder %s18, 1
      %p120 = scmp.ne.s32.totalorder %s115, %s117
      %p121 = scmp.eq.s32.totalorder %s18, 0
      %p122 = por %p120, %p121
      %p123 = scmp.ne.s32.totalorder %s115, %s117
      %p124 = scmp.eq.s32.totalorder %s23, 1
      %p125 = por %p123, %p124
      %p126 = scmp.ne.s32.totalorder %s117, %s118
      %p127 = scmp.eq.s32.totalorder %s23, 0
      %p128 = por %p126, %p127
      %p129 = scmp.ne.s32.totalorder %s117, %s118
      %p130 = scmp.eq.s32.totalorder %s24, 1
      %p131 = por %p129, %p130
      %p133 = scmp.ne.s32.totalorder %s118, %s132
      %p134 = scmp.eq.s32.totalorder %s24, 0
      %p135 = por %p133, %p134
      %s136 = ssub.s32 %s18, %s25
      %p137 = scmp.eq.s32.totalorder %s136, 0
      %s139 = sadd.s32 %s138, 1
      %s140 = scalar_select %p137, %s138, %s139
      %p143 = pneg %p137
      %p144 = scmp.eq.s32.totalorder %s18, 1
      %p145 = por %p143, %p144
      %p146 = scmp.ne.s32.totalorder %s138, %s141
      %p147 = scmp.eq.s32.totalorder %s18, 0
      %p148 = por %p146, %p147
      %p149 = scmp.ne.s32.totalorder %s138, %s141
      %p150 = scmp.eq.s32.totalorder %s23, 1
      %p151 = por %p149, %p150
      %p152 = scmp.ne.s32.totalorder %s141, %s142
      %p153 = scmp.eq.s32.totalorder %s23, 0
      %p154 = por %p152, %p153
      %p155 = scmp.ne.s32.totalorder %s141, %s142
      %p156 = scmp.eq.s32.totalorder %s24, 1
      %p157 = por %p155, %p156
      %p159 = scmp.ne.s32.totalorder %s142, %s158
      %p160 = scmp.eq.s32.totalorder %s24, 0
      %p161 = por %p159, %p160
      %p162 = scmp.le.s32.totalorder 1, %s18
      %p163 = scmp.lt.s32.totalorder %s18, 3
      %p164 = pnand %p162, %p163
      %p165 = pneg %p164
      // Predicated region
      $region9: #{self_attention_pallas.1} parent=5 // pred_check
        _
      $region10: #{self_attention_pallas.1} parent=5 // pred_check_branch
        %167 = sbr.rel (%p164) target = $region12
      $region11: #{self_attention_pallas.1} parent=5 // pred_region
        %s168 = ssub.s32 %s18, 1
        // Predicated region
        $region13: #{self_attention_pallas.1} parent=11 // pred_check
          %p169 = pneg %p65
        $region14: #{self_attention_pallas.1} parent=11 // pred_check_branch
          %171 = sbr.rel (%p169) target = $region16
        $region15: #{self_attention_pallas.1} parent=11 // pred_region
          %s173 = ssub.s32 512, 512
          %174 = vsyncadd [#allocation6], %s173
          %s175 = sshll.u32 [#allocation5], 4
          %s176 = int_to_ptr.vmem [resolvable:$true] %s175
          %181 = dma.hbm_to_vmem [thread:$0]  %s1, 512, %s176, [#allocation6], 128, 128, 8
        $region16: #{self_attention_pallas.1} parent=11 // pred_fallthru
          _
        // Predicated region
        $region17: #{self_attention_pallas.1} parent=11 // pred_check
          %p182 = pneg %p86
        $region18: #{self_attention_pallas.1} parent=11 // pred_check_branch
          %184 = sbr.rel (%p182) target = $region20
        $region19: #{self_attention_pallas.1} parent=11 // pred_region
          _
        $region20: #{self_attention_pallas.1} parent=11 // pred_fallthru
          _
        // Predicated region
        $region21: #{self_attention_pallas.1} parent=11 // pred_check
          %p185 = pneg %p107
        $region22: #{self_attention_pallas.1} parent=11 // pred_check_branch
          %187 = sbr.rel (%p185) target = $region24
        $region23: #{self_attention_pallas.1} parent=11 // pred_region
          %s189 = ssub.s32 512, 512
          %190 = vsyncadd [#allocation6], %s189
          %s191 = sshll.u32 [#allocation7], 4
          %s192 = int_to_ptr.vmem [resolvable:$true] %s191
          %197 = dma.hbm_to_vmem [thread:$0]  %s3, 512, %s192, [#allocation6], 128, 128, 8
        $region24: #{self_attention_pallas.1} parent=11 // pred_fallthru
          _
        // Predicated region
        $region25: #{self_attention_pallas.1} parent=11 // pred_check
          %p198 = pneg %p128
        $region26: #{self_attention_pallas.1} parent=11 // pred_check_branch
          %200 = sbr.rel (%p198) target = $region28
        $region27: #{self_attention_pallas.1} parent=11 // pred_region
          _
        $region28: #{self_attention_pallas.1} parent=11 // pred_fallthru
          _
      $region12: #{self_attention_pallas.1} parent=5 // pred_fallthru
        _
      %p201 = scmp.lt.s32.totalorder %s18, 2
      // Predicated region
      $region29: #{self_attention_pallas.1} parent=5 // pred_check
        %p202 = pneg %p201
      $region30: #{self_attention_pallas.1} parent=5 // pred_check_branch
        %204 = sbr.rel (%p202) target = $region32
      $region31: #{self_attention_pallas.1} parent=5 // pred_region
        // Predicated region
        $region33: #{self_attention_pallas.1} parent=31 // pred_check
          %p205 = pneg %p38
        $region34: #{self_attention_pallas.1} parent=31 // pred_check_branch
          %207 = sbr.rel (%p205) target = $region36
        $region35: #{self_attention_pallas.1} parent=31 // pred_region
          %s208 = sand.u32 %s28, 1
          %s209 = scalar_lea.sflag [#allocation3], %s208
          %s210 = sand.u32 %s28, 1
          %s211 = smul.addr %s210, 8
          %s212 = scalar_lea.vmem [#allocation2], %s211
          %s214 = ssub.s32 128, 128
          %215 = vsyncadd %s209, %s214
          %s216 = smul.addr %s18, 128
          %s217 = scalar_lea.hbm %s0, %s216
          %s219 = sshll.u32 %s212, 4
          %s220 = int_to_ptr.vmem [resolvable:$true] %s219
          %222 = dma.hbm_to_vmem [thread:$0]  %s217, 128, %s220, %s209
        $region36: #{self_attention_pallas.1} parent=31 // pred_fallthru
          _
      $region32: #{self_attention_pallas.1} parent=5 // pred_fallthru
        _
      %p223 = scmp.le.s32.totalorder 1, %s18
      %p224 = scmp.lt.s32.totalorder %s18, 3
      %p225 = pnand %p223, %p224
      %p226 = pneg %p225
      // Predicated region
      $region37: #{self_attention_pallas.1} parent=5 // pred_check
        _
      $region38: #{self_attention_pallas.1} parent=5 // pred_check_branch
        %228 = sbr.rel (%p225) target = $region40
      $region39: #{self_attention_pallas.1} parent=5 // pred_region
        %s229 = ssub.s32 %s18, 1
        %s230 = sand.u32 %s31, 1
        %s231 = scalar_lea.sflag [#allocation3], %s230
        %s232 = sand.u32 %s31, 1
        %s233 = smul.addr %s232, 8
        %s234 = scalar_lea.vmem [#allocation2], %s233
        // Predicated region
        $region41: #{self_attention_pallas.1} parent=39 // pred_check
          %p235 = pneg %p44
        $region42: #{self_attention_pallas.1} parent=39 // pred_check_branch
          %237 = sbr.rel (%p235) target = $region44
        $region43: #{self_attention_pallas.1} parent=39 // pred_region
          %238 = dma.done %s231, 128
        $region44: #{self_attention_pallas.1} parent=39 // pred_fallthru
          _
        // Predicated region
        $region45: #{self_attention_pallas.1} parent=39 // pred_check
          %p239 = pneg %p65
        $region46: #{self_attention_pallas.1} parent=39 // pred_check_branch
          %241 = sbr.rel (%p239) target = $region48
        $region47: #{self_attention_pallas.1} parent=39 // pred_region
          %242 = dma.done [#allocation6], 512
        $region48: #{self_attention_pallas.1} parent=39 // pred_fallthru
          _
        // Predicated region
        $region49: #{self_attention_pallas.1} parent=39 // pred_check
          %p243 = pneg %p107
        $region50: #{self_attention_pallas.1} parent=39 // pred_check_branch
          %245 = sbr.rel (%p243) target = $region52
        $region51: #{self_attention_pallas.1} parent=39 // pred_region
          %246 = dma.done [#allocation6], 512
        $region52: #{self_attention_pallas.1} parent=39 // pred_fallthru
          _
        %s247 = sand.u32 %s31, 1
        %s248 = scalar_lea.sflag [#allocation3], %s247
        %s249 = sand.u32 %s31, 1
        %s250 = smul.addr %s249, 8
        %s251 = scalar_lea.vmem [#allocation2], %s250
        %p252 = pneg %p44
        %p253 = pneg %p41
        %p254 = pneg %p65
        %p255 = pneg %p62
        %p256 = pneg %p86
        %p257 = pneg %p83
        %p258 = pneg %p107
        %p259 = pneg %p104
        %p260 = pneg %p128
        %p261 = pneg %p125
        %p262 = pneg %p154
        %p263 = pneg %p151
        %s264 = sand.u32 %s141, 1
        %s265 = scalar_lea.sflag [#allocation4], %s264
        %s266 = sand.u32 %s141, 1
        %s267 = scalar_lea.vmem [#allocation8], %s266
        %v268 = vld [vmem:[%s234] sm:$0xff]
        %v269 = vld [vmem:[#allocation5] sm:$0xff]
        %v270 = vld [vmem:[#allocation5 + $0x8] sm:$0xff]
        %v271 = vld [vmem:[#allocation5 + $0x10] sm:$0xff]
        %v272 = vld [vmem:[#allocation5 + $0x18] sm:$0xff]
        %v273 = vld [vmem:[%s2] sm:$0x1]
        %v275 = vlaneseq
        %v276 = vshrl.u32 %v275, 7
        %v277 = vsub.s32 0, %v276
        %v278 = vrot.slane %v273, %v277
        %vm280 = vcmask 261120
        %v282 = vsel %vm280, %v268, 0
        %284 = vmatprep.subr.mxu0 0.0
        %285 = vmatpush1.msra.mxu0 %v269
        %286 = vmatprep.subr.mxu0 0.0
        %287 = vmatpush1.msra.mxu0 %v270
        %288 = vmatprep.subr.mxu0 0.0
        %289 = vmatpush1.msra.mxu0 %v271
        %290 = vmatprep.subr.mxu0 0.0
        %291 = vmatpush1.msra.mxu0 %v272
        %292 = vmatprep.subr.mxu0 0.0
        %293 = vmatpush1.msra.mxu0 0.0
        %294 = vmatprep.subr.mxu0 0.0
        %295 = vmatpush1.msra.mxu0 0.0
        %296 = vmatprep.subr.mxu0 0.0
        %297 = vmatpush1.msra.mxu0 0.0
        %298 = vmatprep.subr.mxu0 0.0
        %299 = vmatpush1.msra.mxu0 0.0
        %300 = vmatprep.subr.mxu0 0.0
        %301 = vmatpush1.msra.mxu0 0.0
        %302 = vmatprep.subr.mxu0 0.0
        %303 = vmatpush1.msra.mxu0 0.0
        %304 = vmatprep.subr.mxu0 0.0
        %305 = vmatpush1.msra.mxu0 0.0
        %306 = vmatprep.subr.mxu0 0.0
        %307 = vmatpush1.msra.mxu0 0.0
        %308 = vmatprep.subr.mxu0 0.0
        %309 = vmatpush1.msra.mxu0 0.0
        %310 = vmatprep.subr.mxu0 0.0
        %311 = vmatpush1.msra.mxu0 0.0
        %312 = vmatprep.subr.mxu0 0.0
        %313 = vmatpush1.msra.mxu0 0.0
        %314 = vmatprep.subr.mxu0 0.0
        %315 = vmatpush1.msra.mxu0 0.0
        %316 = vmatprep.subr.mxu0 0.0
        %317 = vmatpush1.msra.mxu0 0.0
        %318 = vmatprep.subr.mxu0 0.0
        %319 = vmatpush1.msra.mxu0 0.0
        %320 = vmatprep.subr.mxu0 0.0
        %321 = vmatpush1.msra.mxu0 0.0
        %322 = vmatprep.subr.mxu0 0.0
        %323 = vmatpush1.msra.mxu0 0.0
        %324 = vmatprep.subr.mxu0 0.0
        %325 = vmatpush1.msra.mxu0 0.0
        %326 = vmatprep.subr.mxu0 0.0
        %327 = vmatpush1.msra.mxu0 0.0
        %328 = vmatprep.subr.mxu0 0.0
        %329 = vmatpush1.msra.mxu0 0.0
        %330 = vmatprep.subr.mxu0 0.0
        %331 = vmatpush1.msra.mxu0 0.0
        %332 = vmatprep.subr.mxu0 0.0
        %333 = vmatpush1.msra.mxu0 0.0
        %334 = vmatprep.subr.mxu0 0.0
        %335 = vmatpush1.msra.mxu0 0.0
        %336 = vmatprep.subr.mxu0 0.0
        %337 = vmatpush1.msra.mxu0 0.0
        %338 = vmatprep.subr.mxu0 0.0
        %339 = vmatpush1.msra.mxu0 0.0
        %340 = vmatprep.subr.mxu0 0.0
        %341 = vmatpush1.msra.mxu0 0.0
        %342 = vmatprep.subr.mxu0 0.0
        %343 = vmatpush1.msra.mxu0 0.0
        %344 = vmatprep.subr.mxu0 0.0
        %345 = vmatpush1.msra.mxu0 0.0
        %346 = vmatprep.subr.mxu0 0.0
        %347 = vmatpush1.msra.mxu0 0.0
        %348 = vmatprep.mubr.f32.mxu0 0.0
        %349 = vmatmul.mubr.f32.gmra.mrb[0].mxu0 %v282
        %v350 = vpop.f32.mrb[0].mxu0
        %v351 = vadd.f32 %v278, %v350
        %v352 = vpop.f32.mrb[0].mxu0
        %353 = vdwg.mxu0
        %v354 = vld [vmem:[%s4] sm:$0x1]
        %356 = vrot.lane.b32.xlu0 %v351, 96
        %v357 = vpop.permute.xlu0 %356
        %vm358 = vcmask 64512
        %v359 = vsel %vm358, %v351, 0
        %v361 = vsel %vm358, %v357, 0
        %363 = vmatprep.subr.mxu0 0.0
        %364 = vmatpush1.xpose.msra.mxu0 %v361
        %365 = vmatprep.subr.mxu0 0.0
        %366 = vmatpush1.xpose.msra.mxu0 0.0
        %367 = vmatprep.subr.mxu0 0.0
        %368 = vmatpush1.xpose.msra.mxu0 0.0
        %369 = vmatprep.subr.mxu0 0.0
        %370 = vmatpush1.xpose.msra.mxu0 0.0
        %371 = vmatprep.subr.mxu0 0.0
        %372 = vmatpush1.xpose.msra.mxu0 0.0
        %373 = vmatprep.subr.mxu0 0.0
        %374 = vmatpush1.xpose.msra.mxu0 0.0
        %375 = vmatprep.subr.mxu0 0.0
        %376 = vmatpush1.xpose.msra.mxu0 0.0
        %377 = vmatprep.subr.mxu0 0.0
        %378 = vmatpush1.xpose.msra.mxu0 0.0
        %379 = vmatprep.subr.mxu0 0.0
        %380 = vmatpush1.xpose.msra.mxu0 0.0
        %381 = vmatprep.subr.mxu0 0.0
        %382 = vmatpush1.xpose.msra.mxu0 0.0
        %383 = vmatprep.subr.mxu0 0.0
        %384 = vmatpush1.xpose.msra.mxu0 0.0
        %385 = vmatprep.subr.mxu0 0.0
        %386 = vmatpush1.xpose.msra.mxu0 0.0
        %387 = vmatprep.subr.mxu0 0.0
        %388 = vmatpush1.xpose.msra.mxu0 0.0
        %389 = vmatprep.subr.mxu0 0.0
        %390 = vmatpush1.xpose.msra.mxu0 0.0
        %391 = vmatprep.subr.mxu0 0.0
        %392 = vmatpush1.xpose.msra.mxu0 0.0
        %393 = vmatprep.subr.mxu0 0.0
        %394 = vmatpush1.xpose.msra.mxu0 0.0
        %395 = vmatprep.subr.mxu0 0.0
        %396 = vmatpush1.xpose.msra.mxu0 0.0
        %397 = vmatprep.subr.mxu0 0.0
        %398 = vmatpush1.xpose.msra.mxu0 0.0
        %399 = vmatprep.subr.mxu0 0.0
        %400 = vmatpush1.xpose.msra.mxu0 0.0
        %401 = vmatprep.subr.mxu0 0.0
        %402 = vmatpush1.xpose.msra.mxu0 0.0
        %403 = vmatprep.subr.mxu0 0.0
        %404 = vmatpush1.xpose.msra.mxu0 0.0
        %405 = vmatprep.subr.mxu0 0.0
        %406 = vmatpush1.xpose.msra.mxu0 0.0
        %407 = vmatprep.subr.mxu0 0.0
        %408 = vmatpush1.xpose.msra.mxu0 0.0
        %409 = vmatprep.subr.mxu0 0.0
        %410 = vmatpush1.xpose.msra.mxu0 0.0
        %411 = vmatprep.subr.mxu0 0.0
        %412 = vmatpush1.xpose.msra.mxu0 0.0
        %413 = vmatprep.subr.mxu0 0.0
        %414 = vmatpush1.xpose.msra.mxu0 0.0
        %415 = vmatprep.subr.mxu0 0.0
        %416 = vmatpush1.xpose.msra.mxu0 0.0
        %417 = vmatprep.subr.mxu0 0.0
        %418 = vmatpush1.xpose.msra.mxu0 0.0
        %419 = vmatprep.subr.mxu0 0.0
        %420 = vmatpush1.xpose.msra.mxu0 0.0
        %421 = vmatprep.subr.mxu0 0.0
        %422 = vmatpush1.xpose.msra.mxu0 0.0
        %423 = vmatprep.subr.mxu0 0.0
        %424 = vmatpush1.xpose.msra.mxu0 0.0
        %425 = vmatprep.subr.mxu0 0.0
        %426 = vmatpush1.xpose.msra.mxu0 0.0
        %427 = vmatprep.mubr.f32.mxu0 0.0
        %428 = vmatmul.mubr.f32.gmra.mrb[0].mxu0 %v359
        %v429 = vpop.f32.mrb[0].mxu0
        %v430 = vadd.f32 0.0, %v429
        %v431 = vpop.f32.mrb[0].mxu0
        %432 = vdwg.mxu0
        %v433 = vsel %vm358, %v430, -inf
        %434 = vmax.xlane.f32.xlu0 %v433
        %v435 = vpop.xlane.xlu0 %434
        %v436 = vsub.f32 %v430, %v435
        %v437 = vmul.f32 %v436, 1.442695
        %v438 = vpow.pop %v437
        %v439 = vsel %vm358, %v438, 0.0
        %440 = vadd.xlane.f32.xlu0 %v439
        %v441 = vpop.xlane.xlu0 %440
        %v442 = vrcp.pop %v441
        %v443 = vmul.f32 %v438, %v442
        %v444 = vsel %vm358, %v443, 0.0
        %v445 = vrot.slane %v444, 4
        %v446 = vadd.f32 %v444, %v445
        %v447 = vrot.slane %v446, 2
        %v448 = vadd.f32 %v446, %v447
        %v449 = vrot.slane %v448, 1
        %v450 = vadd.f32 %v448, %v449
        %v451 = vrcp.pop 8.0
        %v452 = vmul.f32 %v450, %v451
        %453 = vrot.lane.b32.xlu0 %v351, 64
        %v454 = vpop.permute.xlu0 %453
        %v457 = vsel %vm358, %v452, 0
        %459 = vmatprep.subr.mxu0 0.0
        %460 = vmatpush1.msra.mxu0 %v454
        %461 = vmatprep.subr.mxu0 0.0
        %462 = vmatpush1.msra.mxu0 0.0
        %463 = vmatprep.subr.mxu0 0.0
        %464 = vmatpush1.msra.mxu0 0.0
        %465 = vmatprep.subr.mxu0 0.0
        %466 = vmatpush1.msra.mxu0 0.0
        %467 = vmatprep.subr.mxu0 0.0
        %468 = vmatpush1.msra.mxu0 0.0
        %469 = vmatprep.subr.mxu0 0.0
        %470 = vmatpush1.msra.mxu0 0.0
        %471 = vmatprep.subr.mxu0 0.0
        %472 = vmatpush1.msra.mxu0 0.0
        %473 = vmatprep.subr.mxu0 0.0
        %474 = vmatpush1.msra.mxu0 0.0
        %475 = vmatprep.subr.mxu0 0.0
        %476 = vmatpush1.msra.mxu0 0.0
        %477 = vmatprep.subr.mxu0 0.0
        %478 = vmatpush1.msra.mxu0 0.0
        %479 = vmatprep.subr.mxu0 0.0
        %480 = vmatpush1.msra.mxu0 0.0
        %481 = vmatprep.subr.mxu0 0.0
        %482 = vmatpush1.msra.mxu0 0.0
        %483 = vmatprep.subr.mxu0 0.0
        %484 = vmatpush1.msra.mxu0 0.0
        %485 = vmatprep.subr.mxu0 0.0
        %486 = vmatpush1.msra.mxu0 0.0
        %487 = vmatprep.subr.mxu0 0.0
        %488 = vmatpush1.msra.mxu0 0.0
        %489 = vmatprep.subr.mxu0 0.0
        %490 = vmatpush1.msra.mxu0 0.0
        %491 = vmatprep.subr.mxu0 0.0
        %492 = vmatpush1.msra.mxu0 0.0
        %493 = vmatprep.subr.mxu0 0.0
        %494 = vmatpush1.msra.mxu0 0.0
        %495 = vmatprep.subr.mxu0 0.0
        %496 = vmatpush1.msra.mxu0 0.0
        %497 = vmatprep.subr.mxu0 0.0
        %498 = vmatpush1.msra.mxu0 0.0
        %499 = vmatprep.subr.mxu0 0.0
        %500 = vmatpush1.msra.mxu0 0.0
        %501 = vmatprep.subr.mxu0 0.0
        %502 = vmatpush1.msra.mxu0 0.0
        %503 = vmatprep.subr.mxu0 0.0
        %504 = vmatpush1.msra.mxu0 0.0
        %505 = vmatprep.subr.mxu0 0.0
        %506 = vmatpush1.msra.mxu0 0.0
        %507 = vmatprep.subr.mxu0 0.0
        %508 = vmatpush1.msra.mxu0 0.0
        %509 = vmatprep.subr.mxu0 0.0
        %510 = vmatpush1.msra.mxu0 0.0
        %511 = vmatprep.subr.mxu0 0.0
        %512 = vmatpush1.msra.mxu0 0.0
        %513 = vmatprep.subr.mxu0 0.0
        %514 = vmatpush1.msra.mxu0 0.0
        %515 = vmatprep.subr.mxu0 0.0
        %516 = vmatpush1.msra.mxu0 0.0
        %517 = vmatprep.subr.mxu0 0.0
        %518 = vmatpush1.msra.mxu0 0.0
        %519 = vmatprep.subr.mxu0 0.0
        %520 = vmatpush1.msra.mxu0 0.0
        %521 = vmatprep.subr.mxu0 0.0
        %522 = vmatpush1.msra.mxu0 0.0
        %523 = vmatprep.mubr.f32.mxu0 0.0
        %524 = vmatmul.mubr.f32.gmra.mrb[0].mxu0 %v457
        %v525 = vpop.f32.mrb[0].mxu0
        %v526 = vadd.f32 0.0, %v525
        %v527 = vpop.f32.mrb[0].mxu0
        %528 = vdwg.mxu0
        %v529 = vld [vmem:[#allocation7] sm:$0xff]
        %v531 = vsel %vm358, %v526, 0
        %533 = vmatprep.subr.mxu0 0.0
        %534 = vmatpush1.msra.mxu0 %v529
        %535 = vmatprep.subr.mxu0 0.0
        %536 = vmatpush1.msra.mxu0 0.0
        %537 = vmatprep.subr.mxu0 0.0
        %538 = vmatpush1.msra.mxu0 0.0
        %539 = vmatprep.subr.mxu0 0.0
        %540 = vmatpush1.msra.mxu0 0.0
        %541 = vmatprep.subr.mxu0 0.0
        %542 = vmatpush1.msra.mxu0 0.0
        %543 = vmatprep.subr.mxu0 0.0
        %544 = vmatpush1.msra.mxu0 0.0
        %545 = vmatprep.subr.mxu0 0.0
        %546 = vmatpush1.msra.mxu0 0.0
        %547 = vmatprep.subr.mxu0 0.0
        %548 = vmatpush1.msra.mxu0 0.0
        %549 = vmatprep.subr.mxu0 0.0
        %550 = vmatpush1.msra.mxu0 0.0
        %551 = vmatprep.subr.mxu0 0.0
        %552 = vmatpush1.msra.mxu0 0.0
        %553 = vmatprep.subr.mxu0 0.0
        %554 = vmatpush1.msra.mxu0 0.0
        %555 = vmatprep.subr.mxu0 0.0
        %556 = vmatpush1.msra.mxu0 0.0
        %557 = vmatprep.subr.mxu0 0.0
        %558 = vmatpush1.msra.mxu0 0.0
        %559 = vmatprep.subr.mxu0 0.0
        %560 = vmatpush1.msra.mxu0 0.0
        %561 = vmatprep.subr.mxu0 0.0
        %562 = vmatpush1.msra.mxu0 0.0
        %563 = vmatprep.subr.mxu0 0.0
        %564 = vmatpush1.msra.mxu0 0.0
        %565 = vmatprep.subr.mxu0 0.0
        %566 = vmatpush1.msra.mxu0 0.0
        %567 = vmatprep.subr.mxu0 0.0
        %568 = vmatpush1.msra.mxu0 0.0
        %569 = vmatprep.subr.mxu0 0.0
        %570 = vmatpush1.msra.mxu0 0.0
        %571 = vmatprep.subr.mxu0 0.0
        %572 = vmatpush1.msra.mxu0 0.0
        %573 = vmatprep.subr.mxu0 0.0
        %574 = vmatpush1.msra.mxu0 0.0
        %575 = vmatprep.subr.mxu0 0.0
        %576 = vmatpush1.msra.mxu0 0.0
        %577 = vmatprep.subr.mxu0 0.0
        %578 = vmatpush1.msra.mxu0 0.0
        %579 = vmatprep.subr.mxu0 0.0
        %580 = vmatpush1.msra.mxu0 0.0
        %581 = vmatprep.subr.mxu0 0.0
        %582 = vmatpush1.msra.mxu0 0.0
        %583 = vmatprep.subr.mxu0 0.0
        %584 = vmatpush1.msra.mxu0 0.0
        %585 = vmatprep.subr.mxu0 0.0
        %586 = vmatpush1.msra.mxu0 0.0
        %587 = vmatprep.subr.mxu0 0.0
        %588 = vmatpush1.msra.mxu0 0.0
        %589 = vmatprep.subr.mxu0 0.0
        %590 = vmatpush1.msra.mxu0 0.0
        %591 = vmatprep.subr.mxu0 0.0
        %592 = vmatpush1.msra.mxu0 0.0
        %593 = vmatprep.subr.mxu0 0.0
        %594 = vmatpush1.msra.mxu0 0.0
        %595 = vmatprep.subr.mxu0 0.0
        %596 = vmatpush1.msra.mxu0 0.0
        %597 = vmatprep.mubr.f32.mxu0 0.0
        %598 = vmatmul.mubr.f32.gmra.mrb[0].mxu0 %v531
        %v599 = vpop.f32.mrb[0].mxu0
        %v600 = vadd.f32 0.0, %v599
        %v601 = vpop.f32.mrb[0].mxu0
        %602 = vdwg.mxu0
        %v603 = vadd.f32 %v354, %v600
        %604 = vrot.lane.b32.xlu0 %v351, 120
        %v605 = vpop.permute.xlu0 %604
        %606 = vrot.lane.b32.xlu0 %v351, 88
        %v607 = vpop.permute.xlu0 %606
        %v608 = vsel %vm358, %v605, 0
        %v610 = vsel %vm358, %v607, 0
        %612 = vmatprep.subr.mxu0 0.0
        %613 = vmatpush1.xpose.msra.mxu0 %v610
        %614 = vmatprep.subr.mxu0 0.0
        %615 = vmatpush1.xpose.msra.mxu0 0.0
        %616 = vmatprep.subr.mxu0 0.0
        %617 = vmatpush1.xpose.msra.mxu0 0.0
        %618 = vmatprep.subr.mxu0 0.0
        %619 = vmatpush1.xpose.msra.mxu0 0.0
        %620 = vmatprep.subr.mxu0 0.0
        %621 = vmatpush1.xpose.msra.mxu0 0.0
        %622 = vmatprep.subr.mxu0 0.0
        %623 = vmatpush1.xpose.msra.mxu0 0.0
        %624 = vmatprep.subr.mxu0 0.0
        %625 = vmatpush1.xpose.msra.mxu0 0.0
        %626 = vmatprep.subr.mxu0 0.0
        %627 = vmatpush1.xpose.msra.mxu0 0.0
        %628 = vmatprep.subr.mxu0 0.0
        %629 = vmatpush1.xpose.msra.mxu0 0.0
        %630 = vmatprep.subr.mxu0 0.0
        %631 = vmatpush1.xpose.msra.mxu0 0.0
        %632 = vmatprep.subr.mxu0 0.0
        %633 = vmatpush1.xpose.msra.mxu0 0.0
        %634 = vmatprep.subr.mxu0 0.0
        %635 = vmatpush1.xpose.msra.mxu0 0.0
        %636 = vmatprep.subr.mxu0 0.0
        %637 = vmatpush1.xpose.msra.mxu0 0.0
        %638 = vmatprep.subr.mxu0 0.0
        %639 = vmatpush1.xpose.msra.mxu0 0.0
        %640 = vmatprep.subr.mxu0 0.0
        %641 = vmatpush1.xpose.msra.mxu0 0.0
        %642 = vmatprep.subr.mxu0 0.0
        %643 = vmatpush1.xpose.msra.mxu0 0.0
        %644 = vmatprep.subr.mxu0 0.0
        %645 = vmatpush1.xpose.msra.mxu0 0.0
        %646 = vmatprep.subr.mxu0 0.0
        %647 = vmatpush1.xpose.msra.mxu0 0.0
        %648 = vmatprep.subr.mxu0 0.0
        %649 = vmatpush1.xpose.msra.mxu0 0.0
        %650 = vmatprep.subr.mxu0 0.0
        %651 = vmatpush1.xpose.msra.mxu0 0.0
        %652 = vmatprep.subr.mxu0 0.0
        %653 = vmatpush1.xpose.msra.mxu0 0.0
        %654 = vmatprep.subr.mxu0 0.0
        %655 = vmatpush1.xpose.msra.mxu0 0.0
        %656 = vmatprep.subr.mxu0 0.0
        %657 = vmatpush1.xpose.msra.mxu0 0.0
        %658 = vmatprep.subr.mxu0 0.0
        %659 = vmatpush1.xpose.msra.mxu0 0.0
        %660 = vmatprep.subr.mxu0 0.0
        %661 = vmatpush1.xpose.msra.mxu0 0.0
        %662 = vmatprep.subr.mxu0 0.0
        %663 = vmatpush1.xpose.msra.mxu0 0.0
        %664 = vmatprep.subr.mxu0 0.0
        %665 = vmatpush1.xpose.msra.mxu0 0.0
        %666 = vmatprep.subr.mxu0 0.0
        %667 = vmatpush1.xpose.msra.mxu0 0.0
        %668 = vmatprep.subr.mxu0 0.0
        %669 = vmatpush1.xpose.msra.mxu0 0.0
        %670 = vmatprep.subr.mxu0 0.0
        %671 = vmatpush1.xpose.msra.mxu0 0.0
        %672 = vmatprep.subr.mxu0 0.0
        %673 = vmatpush1.xpose.msra.mxu0 0.0
        %674 = vmatprep.subr.mxu0 0.0
        %675 = vmatpush1.xpose.msra.mxu0 0.0
        %676 = vmatprep.mubr.f32.mxu0 0.0
        %677 = vmatmul.mubr.f32.gmra.mrb[0].mxu0 %v608
        %v678 = vpop.f32.mrb[0].mxu0
        %v679 = vadd.f32 0.0, %v678
        %v680 = vpop.f32.mrb[0].mxu0
        %681 = vdwg.mxu0
        %v682 = vsel %vm358, %v679, -inf
        %683 = vmax.xlane.f32.xlu0 %v682
        %v684 = vpop.xlane.xlu0 %683
        %v685 = vsub.f32 %v679, %v684
        %v686 = vmul.f32 %v685, 1.442695
        %v687 = vpow.pop %v686
        %v688 = vsel %vm358, %v687, 0.0
        %689 = vadd.xlane.f32.xlu0 %v688
        %v690 = vpop.xlane.xlu0 %689
        %v691 = vrcp.pop %v690
        %v692 = vmul.f32 %v687, %v691
        %v693 = vsel %vm358, %v692, 0.0
        %v694 = vrot.slane %v693, 4
        %v695 = vadd.f32 %v693, %v694
        %v696 = vrot.slane %v695, 2
        %v697 = vadd.f32 %v695, %v696
        %v698 = vrot.slane %v697, 1
        %v699 = vadd.f32 %v697, %v698
        %v700 = vmul.f32 %v699, %v451
        %701 = vrot.lane.b32.xlu0 %v351, 56
        %v702 = vpop.permute.xlu0 %701
        %v705 = vsel %vm358, %v700, 0
        %707 = vmatprep.subr.mxu0 0.0
        %708 = vmatpush1.msra.mxu0 %v702
        %709 = vmatprep.subr.mxu0 0.0
        %710 = vmatpush1.msra.mxu0 0.0
        %711 = vmatprep.subr.mxu0 0.0
        %712 = vmatpush1.msra.mxu0 0.0
        %713 = vmatprep.subr.mxu0 0.0
        %714 = vmatpush1.msra.mxu0 0.0
        %715 = vmatprep.subr.mxu0 0.0
        %716 = vmatpush1.msra.mxu0 0.0
        %717 = vmatprep.subr.mxu0 0.0
        %718 = vmatpush1.msra.mxu0 0.0
        %719 = vmatprep.subr.mxu0 0.0
        %720 = vmatpush1.msra.mxu0 0.0
        %721 = vmatprep.subr.mxu0 0.0
        %722 = vmatpush1.msra.mxu0 0.0
        %723 = vmatprep.subr.mxu0 0.0
        %724 = vmatpush1.msra.mxu0 0.0
        %725 = vmatprep.subr.mxu0 0.0
        %726 = vmatpush1.msra.mxu0 0.0
        %727 = vmatprep.subr.mxu0 0.0
        %728 = vmatpush1.msra.mxu0 0.0
        %729 = vmatprep.subr.mxu0 0.0
        %730 = vmatpush1.msra.mxu0 0.0
        %731 = vmatprep.subr.mxu0 0.0
        %732 = vmatpush1.msra.mxu0 0.0
        %733 = vmatprep.subr.mxu0 0.0
        %734 = vmatpush1.msra.mxu0 0.0
        %735 = vmatprep.subr.mxu0 0.0
        %736 = vmatpush1.msra.mxu0 0.0
        %737 = vmatprep.subr.mxu0 0.0
        %738 = vmatpush1.msra.mxu0 0.0
        %739 = vmatprep.subr.mxu0 0.0
        %740 = vmatpush1.msra.mxu0 0.0
        %741 = vmatprep.subr.mxu0 0.0
        %742 = vmatpush1.msra.mxu0 0.0
        %743 = vmatprep.subr.mxu0 0.0
        %744 = vmatpush1.msra.mxu0 0.0
        %745 = vmatprep.subr.mxu0 0.0
        %746 = vmatpush1.msra.mxu0 0.0
        %747 = vmatprep.subr.mxu0 0.0
        %748 = vmatpush1.msra.mxu0 0.0
        %749 = vmatprep.subr.mxu0 0.0
        %750 = vmatpush1.msra.mxu0 0.0
        %751 = vmatprep.subr.mxu0 0.0
        %752 = vmatpush1.msra.mxu0 0.0
        %753 = vmatprep.subr.mxu0 0.0
        %754 = vmatpush1.msra.mxu0 0.0
        %755 = vmatprep.subr.mxu0 0.0
        %756 = vmatpush1.msra.mxu0 0.0
        %757 = vmatprep.subr.mxu0 0.0
        %758 = vmatpush1.msra.mxu0 0.0
        %759 = vmatprep.subr.mxu0 0.0
        %760 = vmatpush1.msra.mxu0 0.0
        %761 = vmatprep.subr.mxu0 0.0
        %762 = vmatpush1.msra.mxu0 0.0
        %763 = vmatprep.subr.mxu0 0.0
        %764 = vmatpush1.msra.mxu0 0.0
        %765 = vmatprep.subr.mxu0 0.0
        %766 = vmatpush1.msra.mxu0 0.0
        %767 = vmatprep.subr.mxu0 0.0
        %768 = vmatpush1.msra.mxu0 0.0
        %769 = vmatprep.subr.mxu0 0.0
        %770 = vmatpush1.msra.mxu0 0.0
        %771 = vmatprep.mubr.f32.mxu0 0.0
        %772 = vmatmul.mubr.f32.gmra.mrb[0].mxu0 %v705
        %v773 = vpop.f32.mrb[0].mxu0
        %v774 = vadd.f32 0.0, %v773
        %v775 = vpop.f32.mrb[0].mxu0
        %776 = vdwg.mxu0
        %v777 = vld [vmem:[#allocation7 + $0x8] sm:$0xff]
        %v779 = vsel %vm358, %v774, 0
        %781 = vmatprep.subr.mxu0 0.0
        %782 = vmatpush1.msra.mxu0 %v777
        %783 = vmatprep.subr.mxu0 0.0
        %784 = vmatpush1.msra.mxu0 0.0
        %785 = vmatprep.subr.mxu0 0.0
        %786 = vmatpush1.msra.mxu0 0.0
        %787 = vmatprep.subr.mxu0 0.0
        %788 = vmatpush1.msra.mxu0 0.0
        %789 = vmatprep.subr.mxu0 0.0
        %790 = vmatpush1.msra.mxu0 0.0
        %791 = vmatprep.subr.mxu0 0.0
        %792 = vmatpush1.msra.mxu0 0.0
        %793 = vmatprep.subr.mxu0 0.0
        %794 = vmatpush1.msra.mxu0 0.0
        %795 = vmatprep.subr.mxu0 0.0
        %796 = vmatpush1.msra.mxu0 0.0
        %797 = vmatprep.subr.mxu0 0.0
        %798 = vmatpush1.msra.mxu0 0.0
        %799 = vmatprep.subr.mxu0 0.0
        %800 = vmatpush1.msra.mxu0 0.0
        %801 = vmatprep.subr.mxu0 0.0
        %802 = vmatpush1.msra.mxu0 0.0
        %803 = vmatprep.subr.mxu0 0.0
        %804 = vmatpush1.msra.mxu0 0.0
        %805 = vmatprep.subr.mxu0 0.0
        %806 = vmatpush1.msra.mxu0 0.0
        %807 = vmatprep.subr.mxu0 0.0
        %808 = vmatpush1.msra.mxu0 0.0
        %809 = vmatprep.subr.mxu0 0.0
        %810 = vmatpush1.msra.mxu0 0.0
        %811 = vmatprep.subr.mxu0 0.0
        %812 = vmatpush1.msra.mxu0 0.0
        %813 = vmatprep.subr.mxu0 0.0
        %814 = vmatpush1.msra.mxu0 0.0
        %815 = vmatprep.subr.mxu0 0.0
        %816 = vmatpush1.msra.mxu0 0.0
        %817 = vmatprep.subr.mxu0 0.0
        %818 = vmatpush1.msra.mxu0 0.0
        %819 = vmatprep.subr.mxu0 0.0
        %820 = vmatpush1.msra.mxu0 0.0
        %821 = vmatprep.subr.mxu0 0.0
        %822 = vmatpush1.msra.mxu0 0.0
        %823 = vmatprep.subr.mxu0 0.0
        %824 = vmatpush1.msra.mxu0 0.0
        %825 = vmatprep.subr.mxu0 0.0
        %826 = vmatpush1.msra.mxu0 0.0
        %827 = vmatprep.subr.mxu0 0.0
        %828 = vmatpush1.msra.mxu0 0.0
        %829 = vmatprep.subr.mxu0 0.0
        %830 = vmatpush1.msra.mxu0 0.0
        %831 = vmatprep.subr.mxu0 0.0
        %832 = vmatpush1.msra.mxu0 0.0
        %833 = vmatprep.subr.mxu0 0.0
        %834 = vmatpush1.msra.mxu0 0.0
        %835 = vmatprep.subr.mxu0 0.0
        %836 = vmatpush1.msra.mxu0 0.0
        %837 = vmatprep.subr.mxu0 0.0
        %838 = vmatpush1.msra.mxu0 0.0
        %839 = vmatprep.subr.mxu0 0.0
        %840 = vmatpush1.msra.mxu0 0.0
        %841 = vmatprep.subr.mxu0 0.0
        %842 = vmatpush1.msra.mxu0 0.0
        %843 = vmatprep.subr.mxu0 0.0
        %844 = vmatpush1.msra.mxu0 0.0
        %845 = vmatprep.mubr.f32.mxu0 0.0
        %846 = vmatmul.mubr.f32.gmra.mrb[0].mxu0 %v779
        %v847 = vpop.f32.mrb[0].mxu0
        %v848 = vadd.f32 0.0, %v847
        %v849 = vpop.f32.mrb[0].mxu0
        %850 = vdwg.mxu0
        %v851 = vadd.f32 %v603, %v848
        %852 = vrot.lane.b32.xlu0 %v351, 112
        %v853 = vpop.permute.xlu0 %852
        %854 = vrot.lane.b32.xlu0 %v351, 80
        %v855 = vpop.permute.xlu0 %854
        %v856 = vsel %vm358, %v853, 0
        %v858 = vsel %vm358, %v855, 0
        %860 = vmatprep.subr.mxu0 0.0
        %861 = vmatpush1.xpose.msra.mxu0 %v858
        %862 = vmatprep.subr.mxu0 0.0
        %863 = vmatpush1.xpose.msra.mxu0 0.0
        %864 = vmatprep.subr.mxu0 0.0
        %865 = vmatpush1.xpose.msra.mxu0 0.0
        %866 = vmatprep.subr.mxu0 0.0
        %867 = vmatpush1.xpose.msra.mxu0 0.0
        %868 = vmatprep.subr.mxu0 0.0
        %869 = vmatpush1.xpose.msra.mxu0 0.0
        %870 = vmatprep.subr.mxu0 0.0
        %871 = vmatpush1.xpose.msra.mxu0 0.0
        %872 = vmatprep.subr.mxu0 0.0
        %873 = vmatpush1.xpose.msra.mxu0 0.0
        %874 = vmatprep.subr.mxu0 0.0
        %875 = vmatpush1.xpose.msra.mxu0 0.0
        %876 = vmatprep.subr.mxu0 0.0
        %877 = vmatpush1.xpose.msra.mxu0 0.0
        %878 = vmatprep.subr.mxu0 0.0
        %879 = vmatpush1.xpose.msra.mxu0 0.0
        %880 = vmatprep.subr.mxu0 0.0
        %881 = vmatpush1.xpose.msra.mxu0 0.0
        %882 = vmatprep.subr.mxu0 0.0
        %883 = vmatpush1.xpose.msra.mxu0 0.0
        %884 = vmatprep.subr.mxu0 0.0
        %885 = vmatpush1.xpose.msra.mxu0 0.0
        %886 = vmatprep.subr.mxu0 0.0
        %887 = vmatpush1.xpose.msra.mxu0 0.0
        %888 = vmatprep.subr.mxu0 0.0
        %889 = vmatpush1.xpose.msra.mxu0 0.0
        %890 = vmatprep.subr.mxu0 0.0
        %891 = vmatpush1.xpose.msra.mxu0 0.0
        %892 = vmatprep.subr.mxu0 0.0
        %893 = vmatpush1.xpose.msra.mxu0 0.0
        %894 = vmatprep.subr.mxu0 0.0
        %895 = vmatpush1.xpose.msra.mxu0 0.0
        %896 = vmatprep.subr.mxu0 0.0
        %897 = vmatpush1.xpose.msra.mxu0 0.0
        %898 = vmatprep.subr.mxu0 0.0
        %899 = vmatpush1.xpose.msra.mxu0 0.0
        %900 = vmatprep.subr.mxu0 0.0
        %901 = vmatpush1.xpose.msra.mxu0 0.0
        %902 = vmatprep.subr.mxu0 0.0
        %903 = vmatpush1.xpose.msra.mxu0 0.0
        %904 = vmatprep.subr.mxu0 0.0
        %905 = vmatpush1.xpose.msra.mxu0 0.0
        %906 = vmatprep.subr.mxu0 0.0
        %907 = vmatpush1.xpose.msra.mxu0 0.0
        %908 = vmatprep.subr.mxu0 0.0
        %909 = vmatpush1.xpose.msra.mxu0 0.0
        %910 = vmatprep.subr.mxu0 0.0
        %911 = vmatpush1.xpose.msra.mxu0 0.0
        %912 = vmatprep.subr.mxu0 0.0
        %913 = vmatpush1.xpose.msra.mxu0 0.0
        %914 = vmatprep.subr.mxu0 0.0
        %915 = vmatpush1.xpose.msra.mxu0 0.0
        %916 = vmatprep.subr.mxu0 0.0
        %917 = vmatpush1.xpose.msra.mxu0 0.0
        %918 = vmatprep.subr.mxu0 0.0
        %919 = vmatpush1.xpose.msra.mxu0 0.0
        %920 = vmatprep.subr.mxu0 0.0
        %921 = vmatpush1.xpose.msra.mxu0 0.0
        %922 = vmatprep.subr.mxu0 0.0
        %923 = vmatpush1.xpose.msra.mxu0 0.0
        %924 = vmatprep.mubr.f32.mxu0 0.0
        %925 = vmatmul.mubr.f32.gmra.mrb[0].mxu0 %v856
        %v926 = vpop.f32.mrb[0].mxu0
        %v927 = vadd.f32 0.0, %v926
        %v928 = vpop.f32.mrb[0].mxu0
        %929 = vdwg.mxu0
        %v930 = vsel %vm358, %v927, -inf
        %931 = vmax.xlane.f32.xlu0 %v930
        %v932 = vpop.xlane.xlu0 %931
        %v933 = vsub.f32 %v927, %v932
        %v934 = vmul.f32 %v933, 1.442695
        %v935 = vpow.pop %v934
        %v936 = vsel %vm358, %v935, 0.0
        %937 = vadd.xlane.f32.xlu0 %v936
        %v938 = vpop.xlane.xlu0 %937
        %v939 = vrcp.pop %v938
        %v940 = vmul.f32 %v935, %v939
        %v941 = vsel %vm358, %v940, 0.0
        %v942 = vrot.slane %v941, 4
        %v943 = vadd.f32 %v941, %v942
        %v944 = vrot.slane %v943, 2
        %v945 = vadd.f32 %v943, %v944
        %v946 = vrot.slane %v945, 1
        %v947 = vadd.f32 %v945, %v946
        %v948 = vmul.f32 %v947, %v451
        %949 = vrot.lane.b32.xlu0 %v351, 48
        %v950 = vpop.permute.xlu0 %949
        %v953 = vsel %vm358, %v948, 0
        %955 = vmatprep.subr.mxu0 0.0
        %956 = vmatpush1.msra.mxu0 %v950
        %957 = vmatprep.subr.mxu0 0.0
        %958 = vmatpush1.msra.mxu0 0.0
        %959 = vmatprep.subr.mxu0 0.0
        %960 = vmatpush1.msra.mxu0 0.0
        %961 = vmatprep.subr.mxu0 0.0
        %962 = vmatpush1.msra.mxu0 0.0
        %963 = vmatprep.subr.mxu0 0.0
        %964 = vmatpush1.msra.mxu0 0.0
        %965 = vmatprep.subr.mxu0 0.0
        %966 = vmatpush1.msra.mxu0 0.0
        %967 = vmatprep.subr.mxu0 0.0
        %968 = vmatpush1.msra.mxu0 0.0
        %969 = vmatprep.subr.mxu0 0.0
        %970 = vmatpush1.msra.mxu0 0.0
        %971 = vmatprep.subr.mxu0 0.0
        %972 = vmatpush1.msra.mxu0 0.0
        %973 = vmatprep.subr.mxu0 0.0
        %974 = vmatpush1.msra.mxu0 0.0
        %975 = vmatprep.subr.mxu0 0.0
        %976 = vmatpush1.msra.mxu0 0.0
        %977 = vmatprep.subr.mxu0 0.0
        %978 = vmatpush1.msra.mxu0 0.0
        %979 = vmatprep.subr.mxu0 0.0
        %980 = vmatpush1.msra.mxu0 0.0
        %981 = vmatprep.subr.mxu0 0.0
        %982 = vmatpush1.msra.mxu0 0.0
        %983 = vmatprep.subr.mxu0 0.0
        %984 = vmatpush1.msra.mxu0 0.0
        %985 = vmatprep.subr.mxu0 0.0
        %986 = vmatpush1.msra.mxu0 0.0
        %987 = vmatprep.subr.mxu0 0.0
        %988 = vmatpush1.msra.mxu0 0.0
        %989 = vmatprep.subr.mxu0 0.0
        %990 = vmatpush1.msra.mxu0 0.0
        %991 = vmatprep.subr.mxu0 0.0
        %992 = vmatpush1.msra.mxu0 0.0
        %993 = vmatprep.subr.mxu0 0.0
        %994 = vmatpush1.msra.mxu0 0.0
        %995 = vmatprep.subr.mxu0 0.0
        %996 = vmatpush1.msra.mxu0 0.0
        %997 = vmatprep.subr.mxu0 0.0
        %998 = vmatpush1.msra.mxu0 0.0
        %999 = vmatprep.subr.mxu0 0.0
        %1000 = vmatpush1.msra.mxu0 0.0
        %1001 = vmatprep.subr.mxu0 0.0
        %1002 = vmatpush1.msra.mxu0 0.0
        %1003 = vmatprep.subr.mxu0 0.0
        %1004 = vmatpush1.msra.mxu0 0.0
        %1005 = vmatprep.subr.mxu0 0.0
        %1006 = vmatpush1.msra.mxu0 0.0
        %1007 = vmatprep.subr.mxu0 0.0
        %1008 = vmatpush1.msra.mxu0 0.0
        %1009 = vmatprep.subr.mxu0 0.0
        %1010 = vmatpush1.msra.mxu0 0.0
        %1011 = vmatprep.subr.mxu0 0.0
        %1012 = vmatpush1.msra.mxu0 0.0
        %1013 = vmatprep.subr.mxu0 0.0
        %1014 = vmatpush1.msra.mxu0 0.0
        %1015 = vmatprep.subr.mxu0 0.0
        %1016 = vmatpush1.msra.mxu0 0.0
        %1017 = vmatprep.subr.mxu0 0.0
        %1018 = vmatpush1.msra.mxu0 0.0
        %1019 = vmatprep.mubr.f32.mxu0 0.0
        %1020 = vmatmul.mubr.f32.gmra.mrb[0].mxu0 %v953
        %v1021 = vpop.f32.mrb[0].mxu0
        %v1022 = vadd.f32 0.0, %v1021
        %v1023 = vpop.f32.mrb[0].mxu0
        %1024 = vdwg.mxu0
        %v1025 = vld [vmem:[#allocation7 + $0x10] sm:$0xff]
        %v1027 = vsel %vm358, %v1022, 0
        %1029 = vmatprep.subr.mxu0 0.0
        %1030 = vmatpush1.msra.mxu0 %v1025
        %1031 = vmatprep.subr.mxu0 0.0
        %1032 = vmatpush1.msra.mxu0 0.0
        %1033 = vmatprep.subr.mxu0 0.0
        %1034 = vmatpush1.msra.mxu0 0.0
        %1035 = vmatprep.subr.mxu0 0.0
        %1036 = vmatpush1.msra.mxu0 0.0
        %1037 = vmatprep.subr.mxu0 0.0
        %1038 = vmatpush1.msra.mxu0 0.0
        %1039 = vmatprep.subr.mxu0 0.0
        %1040 = vmatpush1.msra.mxu0 0.0
        %1041 = vmatprep.subr.mxu0 0.0
        %1042 = vmatpush1.msra.mxu0 0.0
        %1043 = vmatprep.subr.mxu0 0.0
        %1044 = vmatpush1.msra.mxu0 0.0
        %1045 = vmatprep.subr.mxu0 0.0
        %1046 = vmatpush1.msra.mxu0 0.0
        %1047 = vmatprep.subr.mxu0 0.0
        %1048 = vmatpush1.msra.mxu0 0.0
        %1049 = vmatprep.subr.mxu0 0.0
        %1050 = vmatpush1.msra.mxu0 0.0
        %1051 = vmatprep.subr.mxu0 0.0
        %1052 = vmatpush1.msra.mxu0 0.0
        %1053 = vmatprep.subr.mxu0 0.0
        %1054 = vmatpush1.msra.mxu0 0.0
        %1055 = vmatprep.subr.mxu0 0.0
        %1056 = vmatpush1.msra.mxu0 0.0
        %1057 = vmatprep.subr.mxu0 0.0
        %1058 = vmatpush1.msra.mxu0 0.0
        %1059 = vmatprep.subr.mxu0 0.0
        %1060 = vmatpush1.msra.mxu0 0.0
        %1061 = vmatprep.subr.mxu0 0.0
        %1062 = vmatpush1.msra.mxu0 0.0
        %1063 = vmatprep.subr.mxu0 0.0
        %1064 = vmatpush1.msra.mxu0 0.0
        %1065 = vmatprep.subr.mxu0 0.0
        %1066 = vmatpush1.msra.mxu0 0.0
        %1067 = vmatprep.subr.mxu0 0.0
        %1068 = vmatpush1.msra.mxu0 0.0
        %1069 = vmatprep.subr.mxu0 0.0
        %1070 = vmatpush1.msra.mxu0 0.0
        %1071 = vmatprep.subr.mxu0 0.0
        %1072 = vmatpush1.msra.mxu0 0.0
        %1073 = vmatprep.subr.mxu0 0.0
        %1074 = vmatpush1.msra.mxu0 0.0
        %1075 = vmatprep.subr.mxu0 0.0
        %1076 = vmatpush1.msra.mxu0 0.0
        %1077 = vmatprep.subr.mxu0 0.0
        %1078 = vmatpush1.msra.mxu0 0.0
        %1079 = vmatprep.subr.mxu0 0.0
        %1080 = vmatpush1.msra.mxu0 0.0
        %1081 = vmatprep.subr.mxu0 0.0
        %1082 = vmatpush1.msra.mxu0 0.0
        %1083 = vmatprep.subr.mxu0 0.0
        %1084 = vmatpush1.msra.mxu0 0.0
        %1085 = vmatprep.subr.mxu0 0.0
        %1086 = vmatpush1.msra.mxu0 0.0
        %1087 = vmatprep.subr.mxu0 0.0
        %1088 = vmatpush1.msra.mxu0 0.0
        %1089 = vmatprep.subr.mxu0 0.0
        %1090 = vmatpush1.msra.mxu0 0.0
        %1091 = vmatprep.subr.mxu0 0.0
        %1092 = vmatpush1.msra.mxu0 0.0
        %1093 = vmatprep.mubr.f32.mxu0 0.0
        %1094 = vmatmul.mubr.f32.gmra.mrb[0].mxu0 %v1027
        %v1095 = vpop.f32.mrb[0].mxu0
        %v1096 = vadd.f32 0.0, %v1095
        %v1097 = vpop.f32.mrb[0].mxu0
        %1098 = vdwg.mxu0
        %v1099 = vadd.f32 %v851, %v1096
        %1100 = vrot.lane.b32.xlu0 %v351, 104
        %v1101 = vpop.permute.xlu0 %1100
        %1102 = vrot.lane.b32.xlu0 %v351, 72
        %v1103 = vpop.permute.xlu0 %1102
        %v1104 = vsel %vm358, %v1101, 0
        %v1106 = vsel %vm358, %v1103, 0
        %1108 = vmatprep.subr.mxu0 0.0
        %1109 = vmatpush1.xpose.msra.mxu0 %v1106
        %1110 = vmatprep.subr.mxu0 0.0
        %1111 = vmatpush1.xpose.msra.mxu0 0.0
        %1112 = vmatprep.subr.mxu0 0.0
        %1113 = vmatpush1.xpose.msra.mxu0 0.0
        %1114 = vmatprep.subr.mxu0 0.0
        %1115 = vmatpush1.xpose.msra.mxu0 0.0
        %1116 = vmatprep.subr.mxu0 0.0
        %1117 = vmatpush1.xpose.msra.mxu0 0.0
        %1118 = vmatprep.subr.mxu0 0.0
        %1119 = vmatpush1.xpose.msra.mxu0 0.0
        %1120 = vmatprep.subr.mxu0 0.0
        %1121 = vmatpush1.xpose.msra.mxu0 0.0
        %1122 = vmatprep.subr.mxu0 0.0
        %1123 = vmatpush1.xpose.msra.mxu0 0.0
        %1124 = vmatprep.subr.mxu0 0.0
        %1125 = vmatpush1.xpose.msra.mxu0 0.0
        %1126 = vmatprep.subr.mxu0 0.0
        %1127 = vmatpush1.xpose.msra.mxu0 0.0
        %1128 = vmatprep.subr.mxu0 0.0
        %1129 = vmatpush1.xpose.msra.mxu0 0.0
        %1130 = vmatprep.subr.mxu0 0.0
        %1131 = vmatpush1.xpose.msra.mxu0 0.0
        %1132 = vmatprep.subr.mxu0 0.0
        %1133 = vmatpush1.xpose.msra.mxu0 0.0
        %1134 = vmatprep.subr.mxu0 0.0
        %1135 = vmatpush1.xpose.msra.mxu0 0.0
        %1136 = vmatprep.subr.mxu0 0.0
        %1137 = vmatpush1.xpose.msra.mxu0 0.0
        %1138 = vmatprep.subr.mxu0 0.0
        %1139 = vmatpush1.xpose.msra.mxu0 0.0
        %1140 = vmatprep.subr.mxu0 0.0
        %1141 = vmatpush1.xpose.msra.mxu0 0.0
        %1142 = vmatprep.subr.mxu0 0.0
        %1143 = vmatpush1.xpose.msra.mxu0 0.0
        %1144 = vmatprep.subr.mxu0 0.0
        %1145 = vmatpush1.xpose.msra.mxu0 0.0
        %1146 = vmatprep.subr.mxu0 0.0
        %1147 = vmatpush1.xpose.msra.mxu0 0.0
        %1148 = vmatprep.subr.mxu0 0.0
        %1149 = vmatpush1.xpose.msra.mxu0 0.0
        %1150 = vmatprep.subr.mxu0 0.0
        %1151 = vmatpush1.xpose.msra.mxu0 0.0
        %1152 = vmatprep.subr.mxu0 0.0
        %1153 = vmatpush1.xpose.msra.mxu0 0.0
        %1154 = vmatprep.subr.mxu0 0.0
        %1155 = vmatpush1.xpose.msra.mxu0 0.0
        %1156 = vmatprep.subr.mxu0 0.0
        %1157 = vmatpush1.xpose.msra.mxu0 0.0
        %1158 = vmatprep.subr.mxu0 0.0
        %1159 = vmatpush1.xpose.msra.mxu0 0.0
        %1160 = vmatprep.subr.mxu0 0.0
        %1161 = vmatpush1.xpose.msra.mxu0 0.0
        %1162 = vmatprep.subr.mxu0 0.0
        %1163 = vmatpush1.xpose.msra.mxu0 0.0
        %1164 = vmatprep.subr.mxu0 0.0
        %1165 = vmatpush1.xpose.msra.mxu0 0.0
        %1166 = vmatprep.subr.mxu0 0.0
        %1167 = vmatpush1.xpose.msra.mxu0 0.0
        %1168 = vmatprep.subr.mxu0 0.0
        %1169 = vmatpush1.xpose.msra.mxu0 0.0
        %1170 = vmatprep.subr.mxu0 0.0
        %1171 = vmatpush1.xpose.msra.mxu0 0.0
        %1172 = vmatprep.mubr.f32.mxu0 0.0
        %1173 = vmatmul.mubr.f32.gmra.mrb[0].mxu0 %v1104
        %v1174 = vpop.f32.mrb[0].mxu0
        %v1175 = vadd.f32 0.0, %v1174
        %v1176 = vpop.f32.mrb[0].mxu0
        %1177 = vdwg.mxu0
        %v1178 = vsel %vm358, %v1175, -inf
        %1179 = vmax.xlane.f32.xlu0 %v1178
        %v1180 = vpop.xlane.xlu0 %1179
        %v1181 = vsub.f32 %v1175, %v1180
        %v1182 = vmul.f32 %v1181, 1.442695
        %v1183 = vpow.pop %v1182
        %v1184 = vsel %vm358, %v1183, 0.0
        %1185 = vadd.xlane.f32.xlu0 %v1184
        %v1186 = vpop.xlane.xlu0 %1185
        %v1187 = vrcp.pop %v1186
        %v1188 = vmul.f32 %v1183, %v1187
        %v1189 = vsel %vm358, %v1188, 0.0
        %v1190 = vrot.slane %v1189, 4
        %v1191 = vadd.f32 %v1189, %v1190
        %v1192 = vrot.slane %v1191, 2
        %v1193 = vadd.f32 %v1191, %v1192
        %v1194 = vrot.slane %v1193, 1
        %v1195 = vadd.f32 %v1193, %v1194
        %v1196 = vmul.f32 %v1195, %v451
        %1197 = vrot.lane.b32.xlu0 %v351, 40
        %v1198 = vpop.permute.xlu0 %1197
        %v1201 = vsel %vm358, %v1196, 0
        %1203 = vmatprep.subr.mxu0 0.0
        %1204 = vmatpush1.msra.mxu0 %v1198
        %1205 = vmatprep.subr.mxu0 0.0
        %1206 = vmatpush1.msra.mxu0 0.0
        %1207 = vmatprep.subr.mxu0 0.0
        %1208 = vmatpush1.msra.mxu0 0.0
        %1209 = vmatprep.subr.mxu0 0.0
        %1210 = vmatpush1.msra.mxu0 0.0
        %1211 = vmatprep.subr.mxu0 0.0
        %1212 = vmatpush1.msra.mxu0 0.0
        %1213 = vmatprep.subr.mxu0 0.0
        %1214 = vmatpush1.msra.mxu0 0.0
        %1215 = vmatprep.subr.mxu0 0.0
        %1216 = vmatpush1.msra.mxu0 0.0
        %1217 = vmatprep.subr.mxu0 0.0
        %1218 = vmatpush1.msra.mxu0 0.0
        %1219 = vmatprep.subr.mxu0 0.0
        %1220 = vmatpush1.msra.mxu0 0.0
        %1221 = vmatprep.subr.mxu0 0.0
        %1222 = vmatpush1.msra.mxu0 0.0
        %1223 = vmatprep.subr.mxu0 0.0
        %1224 = vmatpush1.msra.mxu0 0.0
        %1225 = vmatprep.subr.mxu0 0.0
        %1226 = vmatpush1.msra.mxu0 0.0
        %1227 = vmatprep.subr.mxu0 0.0
        %1228 = vmatpush1.msra.mxu0 0.0
        %1229 = vmatprep.subr.mxu0 0.0
        %1230 = vmatpush1.msra.mxu0 0.0
        %1231 = vmatprep.subr.mxu0 0.0
        %1232 = vmatpush1.msra.mxu0 0.0
        %1233 = vmatprep.subr.mxu0 0.0
        %1234 = vmatpush1.msra.mxu0 0.0
        %1235 = vmatprep.subr.mxu0 0.0
        %1236 = vmatpush1.msra.mxu0 0.0
        %1237 = vmatprep.subr.mxu0 0.0
        %1238 = vmatpush1.msra.mxu0 0.0
        %1239 = vmatprep.subr.mxu0 0.0
        %1240 = vmatpush1.msra.mxu0 0.0
        %1241 = vmatprep.subr.mxu0 0.0
        %1242 = vmatpush1.msra.mxu0 0.0
        %1243 = vmatprep.subr.mxu0 0.0
        %1244 = vmatpush1.msra.mxu0 0.0
        %1245 = vmatprep.subr.mxu0 0.0
        %1246 = vmatpush1.msra.mxu0 0.0
        %1247 = vmatprep.subr.mxu0 0.0
        %1248 = vmatpush1.msra.mxu0 0.0
        %1249 = vmatprep.subr.mxu0 0.0
        %1250 = vmatpush1.msra.mxu0 0.0
        %1251 = vmatprep.subr.mxu0 0.0
        %1252 = vmatpush1.msra.mxu0 0.0
        %1253 = vmatprep.subr.mxu0 0.0
        %1254 = vmatpush1.msra.mxu0 0.0
        %1255 = vmatprep.subr.mxu0 0.0
        %1256 = vmatpush1.msra.mxu0 0.0
        %1257 = vmatprep.subr.mxu0 0.0
        %1258 = vmatpush1.msra.mxu0 0.0
        %1259 = vmatprep.subr.mxu0 0.0
        %1260 = vmatpush1.msra.mxu0 0.0
        %1261 = vmatprep.subr.mxu0 0.0
        %1262 = vmatpush1.msra.mxu0 0.0
        %1263 = vmatprep.subr.mxu0 0.0
        %1264 = vmatpush1.msra.mxu0 0.0
        %1265 = vmatprep.subr.mxu0 0.0
        %1266 = vmatpush1.msra.mxu0 0.0
        %1267 = vmatprep.mubr.f32.mxu0 0.0
        %1268 = vmatmul.mubr.f32.gmra.mrb[0].mxu0 %v1201
        %v1269 = vpop.f32.mrb[0].mxu0
        %v1270 = vadd.f32 0.0, %v1269
        %v1271 = vpop.f32.mrb[0].mxu0
        %1272 = vdwg.mxu0
        %v1273 = vld [vmem:[#allocation7 + $0x18] sm:$0xff]
        %v1275 = vsel %vm358, %v1270, 0
        %1277 = vmatprep.subr.mxu0 0.0
        %1278 = vmatpush1.msra.mxu0 %v1273
        %1279 = vmatprep.subr.mxu0 0.0
        %1280 = vmatpush1.msra.mxu0 0.0
        %1281 = vmatprep.subr.mxu0 0.0
        %1282 = vmatpush1.msra.mxu0 0.0
        %1283 = vmatprep.subr.mxu0 0.0
        %1284 = vmatpush1.msra.mxu0 0.0
        %1285 = vmatprep.subr.mxu0 0.0
        %1286 = vmatpush1.msra.mxu0 0.0
        %1287 = vmatprep.subr.mxu0 0.0
        %1288 = vmatpush1.msra.mxu0 0.0
        %1289 = vmatprep.subr.mxu0 0.0
        %1290 = vmatpush1.msra.mxu0 0.0
        %1291 = vmatprep.subr.mxu0 0.0
        %1292 = vmatpush1.msra.mxu0 0.0
        %1293 = vmatprep.subr.mxu0 0.0
        %1294 = vmatpush1.msra.mxu0 0.0
        %1295 = vmatprep.subr.mxu0 0.0
        %1296 = vmatpush1.msra.mxu0 0.0
        %1297 = vmatprep.subr.mxu0 0.0
        %1298 = vmatpush1.msra.mxu0 0.0
        %1299 = vmatprep.subr.mxu0 0.0
        %1300 = vmatpush1.msra.mxu0 0.0
        %1301 = vmatprep.subr.mxu0 0.0
        %1302 = vmatpush1.msra.mxu0 0.0
        %1303 = vmatprep.subr.mxu0 0.0
        %1304 = vmatpush1.msra.mxu0 0.0
        %1305 = vmatprep.subr.mxu0 0.0
        %1306 = vmatpush1.msra.mxu0 0.0
        %1307 = vmatprep.subr.mxu0 0.0
        %1308 = vmatpush1.msra.mxu0 0.0
        %1309 = vmatprep.subr.mxu0 0.0
        %1310 = vmatpush1.msra.mxu0 0.0
        %1311 = vmatprep.subr.mxu0 0.0
        %1312 = vmatpush1.msra.mxu0 0.0
        %1313 = vmatprep.subr.mxu0 0.0
        %1314 = vmatpush1.msra.mxu0 0.0
        %1315 = vmatprep.subr.mxu0 0.0
        %1316 = vmatpush1.msra.mxu0 0.0
        %1317 = vmatprep.subr.mxu0 0.0
        %1318 = vmatpush1.msra.mxu0 0.0
        %1319 = vmatprep.subr.mxu0 0.0
        %1320 = vmatpush1.msra.mxu0 0.0
        %1321 = vmatprep.subr.mxu0 0.0
        %1322 = vmatpush1.msra.mxu0 0.0
        %1323 = vmatprep.subr.mxu0 0.0
        %1324 = vmatpush1.msra.mxu0 0.0
        %1325 = vmatprep.subr.mxu0 0.0
        %1326 = vmatpush1.msra.mxu0 0.0
        %1327 = vmatprep.subr.mxu0 0.0
        %1328 = vmatpush1.msra.mxu0 0.0
        %1329 = vmatprep.subr.mxu0 0.0
        %1330 = vmatpush1.msra.mxu0 0.0
        %1331 = vmatprep.subr.mxu0 0.0
        %1332 = vmatpush1.msra.mxu0 0.0
        %1333 = vmatprep.subr.mxu0 0.0
        %1334 = vmatpush1.msra.mxu0 0.0
        %1335 = vmatprep.subr.mxu0 0.0
        %1336 = vmatpush1.msra.mxu0 0.0
        %1337 = vmatprep.subr.mxu0 0.0
        %1338 = vmatpush1.msra.mxu0 0.0
        %1339 = vmatprep.subr.mxu0 0.0
        %1340 = vmatpush1.msra.mxu0 0.0
        %1341 = vmatprep.mubr.f32.mxu0 0.0
        %1342 = vmatmul.mubr.f32.gmra.mrb[0].mxu0 %v1275
        %v1343 = vpop.f32.mrb[0].mxu0
        %v1344 = vadd.f32 0.0, %v1343
        %v1345 = vpop.f32.mrb[0].mxu0
        %1346 = vdwg.mxu0
        %v1347 = vadd.f32 %v1099, %v1344
        %vm1348 = vcmask 253952
        %1349 = vst.msk [vmem:[%s267] sm:$0x1] %vm1348, %v1347
        %s1350 = sand.u32 %s141, 1
        %s1351 = scalar_lea.sflag [#allocation4], %s1350
        %s1352 = sand.u32 %s141, 1
        %s1353 = scalar_lea.vmem [#allocation8], %s1352
        // Predicated region
        $region53: #{self_attention_pallas.1} parent=39 // pred_check
          %p1354 = pneg %p151
        $region54: #{self_attention_pallas.1} parent=39 // pred_check_branch
          %1356 = sbr.rel (%p1354) target = $region56
        $region55: #{self_attention_pallas.1} parent=39 // pred_region
          %s1358 = ssub.s32 16, 16
          %1359 = vsyncadd %s1351, %s1358
          %s1360 = smul.addr %s23, 16
          %s1361 = scalar_lea.hbm %s5, %s1360
          %s1363 = sshll.u32 %s1353, 4
          %s1364 = int_to_ptr.vmem [resolvable:$true] %s1363
          %1366 = dma.vmem_to_hbm [thread:$0]  %s1364, 16, %s1361, %s1351
        $region56: #{self_attention_pallas.1} parent=39 // pred_fallthru
          _
      $region40: #{self_attention_pallas.1} parent=5 // pred_fallthru
        _
      %p1367 = scmp.le.s32.totalorder 2, %s18
      // Predicated region
      $region57: #{self_attention_pallas.1} parent=5 // pred_check
        %p1368 = pneg %p1367
      $region58: #{self_attention_pallas.1} parent=5 // pred_check_branch
        %1370 = sbr.rel (%p1368) target = $region60
      $region59: #{self_attention_pallas.1} parent=5 // pred_region
        %s1371 = ssub.s32 %s18, 2
        // Predicated region
        $region61: #{self_attention_pallas.1} parent=59 // pred_check
          %p1372 = pneg %p157
        $region62: #{self_attention_pallas.1} parent=59 // pred_check_branch
          %1374 = sbr.rel (%p1372) target = $region64
        $region63: #{self_attention_pallas.1} parent=59 // pred_region
          %s1375 = sand.u32 %s142, 1
          %s1376 = scalar_lea.sflag [#allocation4], %s1375
          %s1377 = sand.u32 %s142, 1
          %s1378 = scalar_lea.vmem [#allocation8], %s1377
          %1379 = dma.done %s1376, 16
        $region64: #{self_attention_pallas.1} parent=59 // pred_fallthru
          _
      $region60: #{self_attention_pallas.1} parent=5 // pred_fallthru
        _
    $region6: #{self_attention_pallas.1} parent=1 // loop_footer
      %s22 = sadd.s32 1, %s18
    $region7: #{self_attention_pallas.1} parent=1 // loop_footer_branch
      %17 = sbr.rel target = $region3
    $region8: #{self_attention_pallas.1} parent=1 // loop_exit
      _
    %1380 = vsyncpa [#allocation3], 1
    %s1381 = scalar_lea.sflag [#allocation3], 1
    %1382 = vsyncpa %s1381, 1
    %1383 = vsyncpa [#allocation6], 1
    %1384 = vsyncpa [#allocation4], 1
    %s1385 = scalar_lea.sflag [#allocation4], 1
    %1386 = vsyncpa %s1385, 1

</llo_original>
